<compile_context>
chip_gen: v5e
topology: v5e:2x2
jax: 0.10.0
libtpu: 0.0.40
codegen_flags: <defaults>
</compile_context>

<pallas_src>
import functools
import math

import jax
import jax.numpy as jnp
from jax.experimental import pallas as pl
from jax.experimental.pallas import tpu as pltpu


_MASK_VALUE = -float(jnp.finfo(jnp.float32).max)   # matches -torch.finfo(f32).max


# ---------------------------------------------------------------------------
# Math helpers (pure jnp; used both inside the kernel and in the reference).
# ---------------------------------------------------------------------------
def _gelu(x):
    # tanh-approximate GELU: the transcendental goes to the EUP slot instead of a
    # ~10-op VALU erf polynomial.  |diff| vs PyTorch's exact-erf F.gelu <~1e-3.
    # TODO(synk): exact-erf GELU if bit-closeness to torch is ever required.
    c = math.sqrt(2.0 / math.pi)
    return 0.5 * x * (1.0 + jnp.tanh(c * (x + 0.044715 * x * x * x)))


def _layernorm(x, w, b, eps=1e-5):
    mu = jnp.mean(x, axis=-1, keepdims=True)
    var = jnp.mean((x - mu) ** 2, axis=-1, keepdims=True)
    return (x - mu) * jax.lax.rsqrt(var + eps) * w + b


# ---------------------------------------------------------------------------
# Pallas kernel: grid = (batch_tiles, layer_steps).
#   * streaming mode:  layer_steps = L, each step sees ONE layer's weights.
#   * resident mode:   layer_steps = 1, weights passed as full (L, ...) blocks and
#                      the layer loop is unrolled in-kernel.
# The f32 residual stream is carried across the layer axis in x_scratch.
# ---------------------------------------------------------------------------
def masked_encoder_kernel(
    x_ref, mq_ref, mk_ref,
    win_ref, wout_ref, small_ref, fc1b_ref, final_ref,
    o_ref,
    x_scratch,
    *, num_heads,
):
    f32, bf16 = jnp.float32, jnp.bfloat16
    lstep = pl.program_id(1)
    n_lsteps = pl.num_programs(1)
    layers_here = win_ref.shape[0]                 # 1 (streaming) or L (resident)
    bt, n_seq, dim = x_ref.shape
    hd = dim // num_heads
    scale = 1.0 / math.sqrt(hd)

    # First layer step for this batch tile: x (+pos, folded in the wrapper) -> scratch.
    @pl.when(lstep == 0)
    def _():
        x_scratch[...] = x_ref[...].astype(f32).reshape(bt * n_seq, dim)

    # Pairwise keep-mask built in-kernel from the 1-D masks (O(N) HBM, not O(N^2)).
    keep = (mq_ref[...] * mk_ref[...]) > 0.0                              # (Bt, N, N)

    x = x_scratch[...]                                                    # (Bt*N, C) f32

    for l in range(layers_here):                   # static; 1 iter in streaming mode
        win = win_ref[l]                           # (C, 3C+ff) bf16  [qkv | fc1]
        wout = wout_ref[l]                         # (C+ff, C) bf16   [proj ; fc2]
        small = small_ref[l]                       # (6, C)  f32
        fc1_b = fc1b_ref[l]                        # (1, ff) f32

        # ----------------- masked self-attention (pre-norm) -----------------
        xn = _layernorm(x, small[0:1], small[1:2])
        xn_b = xn.astype(bf16)
        # Fused QKV: one full-width MXU matmul per layer.
        qkv = jnp.dot(xn_b, win[:, :3 * dim], preferred_element_type=f32)  # (Bt*N, 3C)

        head_outs = []
        for h in range(num_heads):
            # 1/sqrt(hd) folded into q (O(N*C) mults) instead of the (Bt,N,N) scores.
            q = qkv[:, h * hd:(h + 1) * hd] * scale
            k = qkv[:, dim + h * hd: dim + (h + 1) * hd]
            v = qkv[:, 2 * dim + h * hd: 2 * dim + (h + 1) * hd]
            q3 = q.reshape(bt, n_seq, hd).astype(bf16)
            k3 = k.reshape(bt, n_seq, hd).astype(bf16)
            v3 = v.reshape(bt, n_seq, hd).astype(bf16)

            s = jnp.einsum('bqd,bkd->bqk', q3, k3,
                           preferred_element_type=f32)                    # (Bt, N, N)
            s = jnp.where(keep, s, _MASK_VALUE)                           # masked_fill_
            m = jnp.max(s, axis=-1, keepdims=True)
            e = jnp.exp(s - m)
            p = e * pl.reciprocal(jnp.sum(e, axis=-1, keepdims=True), approx=True)
            o = jnp.einsum('bqk,bkd->bqd', p.astype(bf16), v3,
                           preferred_element_type=f32)                    # (Bt, N, hd)
            head_outs.append(o.reshape(bt * n_seq, hd))
        # TODO(synk): at real CCT sequence lengths, tile keys flash-style instead of
        # materializing the full (Bt,N,N) scores.
        heads = jnp.concatenate(head_outs, axis=-1).astype(bf16)          # (Bt*N, C)
        # Single full-width output projection (== concat(heads) @ W_proj).
        x = x + jnp.dot(heads, wout[:dim, :], preferred_element_type=f32) + small[4:5]

        # ----------------- MLP -----------------
        x = _layernorm(x, small[2:3], small[3:4])
        hid = _gelu(jnp.dot(x.astype(bf16), win[:, 3 * dim:],
                            preferred_element_type=f32) + fc1_b)
        x = x + jnp.dot(hid.astype(bf16), wout[dim:, :],
                        preferred_element_type=f32) + small[5:6]

    x_scratch[...] = x

    # --------- final LayerNorm + sequence pooling (last layer step) ---------
    @pl.when(lstep == n_lsteps - 1)
    def _():
        final = final_ref[...]                       # (4, C): normf_w, normf_b, pool_w, pool_b
        xf = _layernorm(x, final[0:1], final[1:2])   # (Bt*N, C)
        xf3 = xf.reshape(bt, n_seq, dim)             # (Bt, N, C)
        logits = jnp.sum(xf3 * final[2:3], axis=-1, keepdims=True) + final[3:4, 0:1]
        m = jnp.max(logits, axis=1, keepdims=True)
        e = jnp.exp(logits - m)
        w = e / jnp.sum(e, axis=1, keepdims=True)
        o_ref[...] = jnp.sum(w * xf3, axis=1).astype(o_ref.dtype)


# ---------------------------------------------------------------------------
# Parameter packing: 20 tensors -> 5 kernel refs (plus x and two 1-D mask views).
# ---------------------------------------------------------------------------
def pack_params(params):
    bf16, f32 = jnp.bfloat16, jnp.float32
    win = jnp.concatenate([params['qkv_w'], params['fc1_w']], axis=-1).astype(bf16)
    wout = jnp.concatenate([params['proj_w'], params['fc2_w']], axis=1).astype(bf16)
    small = jnp.stack([params['ln_pre_w'], params['ln_pre_b'],
                       params['ln1_w'], params['ln1_b'],
                       params['proj_b'], params['fc2_b']], axis=1).astype(f32)  # (L,6,C)
    fc1_b = params['fc1_b'][:, None, :].astype(f32)                              # (L,1,ff)
    C = params['normf_w'].shape[-1]
    final = jnp.stack([params['normf_w'], params['normf_b'], params['pool_w'],
                       jnp.broadcast_to(params['pool_b'].reshape(()), (C,))],
                      axis=0).astype(f32)                                        # (4,C)
    return win, wout, small, fc1_b, final


# ---------------------------------------------------------------------------
# Wrapper
# ---------------------------------------------------------------------------
def masked_transformer_classifier_forward(x, mask, params, *, num_heads,
                                          max_batch_tile=128, stream_layers=None):
    B, N, C = x.shape
    L = params['qkv_w'].shape[0]
    assert C % num_heads == 0
    assert N % 8 == 0, "sequence length must be a multiple of 8 (f32 sublane tiling)"

    win, wout, small, fc1_b, final = pack_params(params)

    if stream_layers is None:
        # Resident weights when the whole stack comfortably fits VMEM; otherwise
        # stream one layer per grid step (large CCTs, v7x's 64 MiB VMEM).
        weight_bytes = win.size * 2 + wout.size * 2 + (small.size + fc1_b.size) * 4
        stream_layers = weight_bytes > 12 * 1024 * 1024

    # x + positional embedding folded here: one fused XLA add, no pos ref in-kernel.
    xp = x.astype(jnp.float32) + params['pos'].astype(jnp.float32)

    if mask is None:
        mask = jnp.ones((B, N), jnp.float32)
    mask = mask.astype(jnp.float32)
    mq = mask[:, :, None]                                    # (B, N, 1) query-side
    mk = mask[:, None, :]                                    # (B, 1, N) key-side

    # Batch tile: largest divisor of B not exceeding max_batch_tile.
    # NOTE: for awkward/prime B, pad the batch instead of letting bt collapse to 1.
    # NOTE: on v7x keep B // bt >= 2 so both TensorCores get a parallel tile.
    bt = min(B, max_batch_tile)
    while B % bt:
        bt -= 1

    Lb = 1 if stream_layers else L
    n_lsteps = L if stream_layers else 1

    def layer_spec(arr):
        blk = (Lb,) + arr.shape[1:]
        zeros = (0,) * (arr.ndim - 1)
        if stream_layers:
            return pl.BlockSpec(blk, lambda b, l, _z=zeros: (l,) + _z)
        return pl.BlockSpec(blk, lambda b, l, _z=zeros: (0,) + _z)

    kernel = functools.partial(masked_encoder_kernel, num_heads=num_heads)

    in_specs = [
        pl.BlockSpec((bt, N, C), lambda b, l: (b, 0, 0)),    # x (+pos), one batch tile
        pl.BlockSpec((bt, N, 1), lambda b, l: (b, 0, 0)),    # mask, query view
        pl.BlockSpec((bt, 1, N), lambda b, l: (b, 0, 0)),    # mask, key view
        layer_spec(win), layer_spec(wout), layer_spec(small), layer_spec(fc1_b),
        pl.BlockSpec((4, C), lambda b, l: (0, 0)),           # final norm + pool params
    ]

    out = pl.pallas_call(
        kernel,
        out_shape=jax.ShapeDtypeStruct((B, C), jnp.float32),
        grid=(B // bt, n_lsteps),
        in_specs=in_specs,
        out_specs=pl.BlockSpec((bt, C), lambda b, l: (b, 0)),
        scratch_shapes=[pltpu.VMEM((bt * N, C), jnp.float32)],   # carried residual stream
        compiler_params=pltpu.CompilerParams(
            dimension_semantics=("parallel", "arbitrary"),
            vmem_limit_bytes=48 * 1024 * 1024),              # above v5e/v6e scoped default,
                                                             # within v7x's 64 MiB physical
    )(xp, mq, mk, win, wout, small, fc1_b, final)
    return out


# ---------------------------------------------------------------------------
# Parameters.  Mirrors MaskedTransformerClassifier.init_weight:
# Linear weights ~ trunc_normal(std=0.02), biases 0, LayerNorm w=1 / b=0,
# default 'sine' positional embedding (fixed, with a zero padding row).
# ---------------------------------------------------------------------------
def sinusoidal_embedding(seq_len, dim):
    n = seq_len - 1
    p = jnp.arange(n, dtype=jnp.float32)[:, None]
    i = jnp.arange(dim, dtype=jnp.float32)[None, :]
    angle = p / jnp.power(10000.0, 2.0 * jnp.floor(i / 2.0) / dim)
    pe = jnp.where((jnp.arange(dim)[None, :] % 2) == 0, jnp.sin(angle), jnp.cos(angle))
    pe = jnp.concatenate([jnp.zeros((1, dim), jnp.float32), pe], axis=0)
    return pe[None, :, :]                                    # (1, seq_len, dim)


def init_params(key, *, num_layers, num_heads, seq_len, dim, mlp_ratio):
    ff = int(dim * mlp_ratio)
    ks = jax.random.split(key, 5)

    def tn(k, shape, std=0.02):
        return (std * jax.random.truncated_normal(k, -2.0, 2.0, shape)).astype(jnp.float32)

    return dict(
        pos=sinusoidal_embedding(seq_len, dim),
        ln_pre_w=jnp.ones((num_layers, dim), jnp.float32),
        ln_pre_b=jnp.zeros((num_layers, dim), jnp.float32),
        # qkv Linear(dim, 3*dim, bias=False), stored (in, out); out columns = [q|k|v],
        # head h of q = columns h*hd:(h+1)*hd (exactly PyTorch's reshape(...,3,H,hd)).
        qkv_w=tn(ks[0], (num_layers, dim, 3 * dim)),
        proj_w=tn(ks[1], (num_layers, dim, dim)),
        proj_b=jnp.zeros((num_layers, dim), jnp.float32),
        ln1_w=jnp.ones((num_layers, dim), jnp.float32),
        ln1_b=jnp.zeros((num_layers, dim), jnp.float32),
        fc1_w=tn(ks[2], (num_layers, dim, ff)),
        fc1_b=jnp.zeros((num_layers, ff), jnp.float32),
        fc2_w=tn(ks[3], (num_layers, ff, dim)),
        fc2_b=jnp.zeros((num_layers, dim), jnp.float32),
        normf_w=jnp.ones((dim,), jnp.float32),
        normf_b=jnp.zeros((dim,), jnp.float32),
        pool_w=tn(ks[4], (dim,)),
        pool_b=jnp.zeros((1,), jnp.float32),
    )


# ---------------------------------------------------------------------------
# Pure-JAX reference (PyTorch-structured math, same bf16-operand convention).
# ---------------------------------------------------------------------------
def reference_forward(x, mask, params, *, num_heads):
    f32, bf16 = jnp.float32, jnp.bfloat16
    B, N, C = x.shape
    L = params['qkv_w'].shape[0]
    hd = C // num_heads
    scale = 1.0 / math.sqrt(hd)

    xb = x.astype(f32) + params['pos'].astype(f32)
    if mask is None:
        mask = jnp.ones((B, N), f32)
    keep = (mask[:, :, None] > 0) & (mask[:, None, :] > 0)               # (B, N, N)

    for l in range(L):
        xn = _layernorm(xb, params['ln_pre_w'][l], params['ln_pre_b'][l])
        xn_b = xn.astype(bf16)
        qkv = jnp.dot(xn_b, params['qkv_w'][l].astype(bf16),
                      preferred_element_type=f32)                        # (B, N, 3C)
        head_outs = []
        for h in range(num_heads):
            q = qkv[..., h * hd:(h + 1) * hd]
            k = qkv[..., C + h * hd: C + (h + 1) * hd]
            v = qkv[..., 2 * C + h * hd: 2 * C + (h + 1) * hd]
            s = jnp.einsum('bqd,bkd->bqk', q.astype(bf16), k.astype(bf16),
                           preferred_element_type=f32) * scale
            s = jnp.where(keep, s, _MASK_VALUE)
            m = jnp.max(s, axis=-1, keepdims=True)
            e = jnp.exp(s - m)
            p = e / jnp.sum(e, axis=-1, keepdims=True)
            head_outs.append(jnp.einsum('bqk,bkd->bqd', p.astype(bf16), v.astype(bf16),
                                        preferred_element_type=f32))
        heads = jnp.concatenate(head_outs, axis=-1).astype(bf16)
        attn = jnp.dot(heads, params['proj_w'][l].astype(bf16),
                       preferred_element_type=f32) + params['proj_b'][l]
        xb = xb + attn
        xb = _layernorm(xb, params['ln1_w'][l], params['ln1_b'][l])
        hid = _gelu(jnp.dot(xb.astype(bf16), params['fc1_w'][l].astype(bf16),
                            preferred_element_type=f32) + params['fc1_b'][l])
        xb = xb + jnp.dot(hid.astype(bf16), params['fc2_w'][l].astype(bf16),
                          preferred_element_type=f32) + params['fc2_b'][l]

    xf = _layernorm(xb, params['normf_w'], params['normf_b'])
    logits = jnp.sum(xf * params['pool_w'], axis=-1, keepdims=True) + params['pool_b'][0]
    m = jnp.max(logits, axis=1, keepdims=True)
    e = jnp.exp(logits - m)
    w = e / jnp.sum(e, axis=1, keepdims=True)
    return jnp.sum(w * xf, axis=1)


if __name__ == "__main__":
    # Small config consistent with the module: embedding_dim=32, num_layers=2,
    # num_heads=4, mlp_ratio=2.0, seq_len=8, seq_pool=True, 'sine' positional emb.
    B, N, C = 2, 8, 32
    NUM_LAYERS, NUM_HEADS, MLP_RATIO = 2, 4, 2.0

    key = jax.random.PRNGKey(0)
    kx, kp = jax.random.split(key)
    x = jax.random.normal(kx, (B, N, C), dtype=jnp.float32)
    # batch 0: all positions valid; batch 1: last two key/query positions masked out.
    mask = jnp.array([[1.0] * N, [1.0] * (N - 2) + [0.0] * 2], dtype=jnp.float32)

    params = init_params(kp, num_layers=NUM_LAYERS, num_heads=NUM_HEADS,
                         seq_len=N, dim=C, mlp_ratio=MLP_RATIO)

    ref = reference_forward(x, mask, params, num_heads=NUM_HEADS)

    # Resident-weights mode (auto-selected at this size: whole stack in VMEM, 1 layer step).
    out_res = jax.block_until_ready(
        masked_transformer_classifier_forward(x, mask, params, num_heads=NUM_HEADS))
    # Layer-streaming mode (what large CCTs use against v7x's 64 MiB VMEM).
    out_str = jax.block_until_ready(
        masked_transformer_classifier_forward(x, mask, params, num_heads=NUM_HEADS,
                                              stream_layers=True))

    for out in (out_res, out_str):
        assert out.shape == (B, C)
        err = float(jnp.max(jnp.abs(out - ref)))
        assert jnp.allclose(out, ref, rtol=2e-3, atol=2e-3), \
            f"mismatch vs pure-JAX reference (max abs err {err})"

    # TODO(synk): seq_pool=False (class-token) branch not implemented; eval-mode only.
    print("KERNEL_OK")
</pallas_src>

<mosaic_0001>
module attributes {stable_mosaic.version = 11 : i64} {
  func.func @masked_encoder_kernel(%arg0: i32, %arg1: i32, %arg2: memref<2x8x32xf32, #tpu.memory_space<vmem>>, %arg3: memref<2x8x1xf32, #tpu.memory_space<vmem>>, %arg4: memref<2x1x8xf32, #tpu.memory_space<vmem>>, %arg5: memref<2x32x160xbf16, #tpu.memory_space<vmem>>, %arg6: memref<2x96x32xbf16, #tpu.memory_space<vmem>>, %arg7: memref<2x6x32xf32, #tpu.memory_space<vmem>>, %arg8: memref<2x1x64xf32, #tpu.memory_space<vmem>>, %arg9: memref<4x32xf32, #tpu.memory_space<vmem>>, %arg10: memref<2x32xf32, #tpu.memory_space<vmem>>, %arg11: memref<16x32xf32, #tpu.memory_space<vmem>>) attributes {dimension_semantics = [#tpu.dimension_semantics<parallel>, #tpu.dimension_semantics<arbitrary>], iteration_bounds = array<i64: 1, 1>, scalar_prefetch = 0 : i64, scratch_operands = 1 : i64, tpu.core_type = #tpu.core_type<tc>, window_params = [{transform_indices = @transform_0, window_bounds = array<i64: 2, 8, 32>}, {transform_indices = @transform_1, window_bounds = array<i64: 2, 8, 1>}, {transform_indices = @transform_2, window_bounds = array<i64: 2, 1, 8>}, {pipeline_mode = #tpu.pipeline_mode<synchronous>, transform_indices = @transform_3, window_bounds = array<i64: 2, 32, 160>}, {pipeline_mode = #tpu.pipeline_mode<synchronous>, transform_indices = @transform_4, window_bounds = array<i64: 2, 96, 32>}, {pipeline_mode = #tpu.pipeline_mode<synchronous>, transform_indices = @transform_5, window_bounds = array<i64: 2, 6, 32>}, {pipeline_mode = #tpu.pipeline_mode<synchronous>, transform_indices = @transform_6, window_bounds = array<i64: 2, 1, 64>}, {pipeline_mode = #tpu.pipeline_mode<synchronous>, transform_indices = @transform_7, window_bounds = array<i64: 4, 32>}, {transform_indices = @transform_8, window_bounds = array<i64: 2, 32>}]} {
    %c0_i32 = arith.constant 0 : i32
    %0 = arith.cmpi eq, %arg1, %c0_i32 : i32
    %1 = arith.extui %0 : i1 to i32
    %c0_i32_0 = arith.constant 0 : i32
    %2 = arith.cmpi ne, %1, %c0_i32_0 : i32
    scf.if %2 {
      %c0_119 = arith.constant 0 : index
      %c0_120 = arith.constant 0 : index
      %c0_121 = arith.constant 0 : index
      %415 = vector.load %arg2[%c0_119, %c0_120, %c0_121] : memref<2x8x32xf32, #tpu.memory_space<vmem>>, vector<2x8x32xf32>
      %416 = vector.shape_cast %415 : vector<2x8x32xf32> to vector<16x32xf32>
      %c0_122 = arith.constant 0 : index
      %c0_123 = arith.constant 0 : index
      %417 = vector.load %arg11[%c0_122, %c0_123] : memref<16x32xf32, #tpu.memory_space<vmem>>, vector<16x32xf32>
      tpu.vector_store %arg11[%c0_122, %c0_123], %416 {strides = array<i32>} : memref<16x32xf32, #tpu.memory_space<vmem>>, vector<16x32xf32>,
    } else {
    }
    %c0 = arith.constant 0 : index
    %c0_1 = arith.constant 0 : index
    %c0_2 = arith.constant 0 : index
    %3 = vector.load %arg3[%c0, %c0_1, %c0_2] : memref<2x8x1xf32, #tpu.memory_space<vmem>>, vector<2x8x1xf32>
    %c0_3 = arith.constant 0 : index
    %c0_4 = arith.constant 0 : index
    %c0_5 = arith.constant 0 : index
    %4 = vector.load %arg4[%c0_3, %c0_4, %c0_5] : memref<2x1x8xf32, #tpu.memory_space<vmem>>, vector<2x1x8xf32>
    %5 = vector.broadcast %3 : vector<2x8x1xf32> to vector<2x8x8xf32>
    %6 = vector.broadcast %4 : vector<2x1x8xf32> to vector<2x8x8xf32>
    %7 = arith.mulf %5, %6 : vector<2x8x8xf32>
    %cst = arith.constant 0.000000e+00 : f32
    %8 = vector.broadcast %cst : f32 to vector<2x8x8xf32>
    %9 = arith.cmpf ogt, %7, %8 : vector<2x8x8xf32>
    %c0_6 = arith.constant 0 : index
    %c0_7 = arith.constant 0 : index
    %10 = vector.load %arg11[%c0_6, %c0_7] : memref<16x32xf32, #tpu.memory_space<vmem>>, vector<16x32xf32>
    %c0_8 = arith.constant 0 : index
    %c0_9 = arith.constant 0 : index
    %c0_10 = arith.constant 0 : index
    %11 = vector.load %arg5[%c0_8, %c0_9, %c0_10] : memref<2x32x160xbf16, #tpu.memory_space<vmem>>, vector<1x32x160xbf16>
    %12 = vector.shape_cast %11 : vector<1x32x160xbf16> to vector<32x160xbf16>
    %c0_11 = arith.constant 0 : index
    %c0_12 = arith.constant 0 : index
    %c0_13 = arith.constant 0 : index
    %13 = vector.load %arg6[%c0_11, %c0_12, %c0_13] : memref<2x96x32xbf16, #tpu.memory_space<vmem>>, vector<1x96x32xbf16>
    %14 = vector.shape_cast %13 : vector<1x96x32xbf16> to vector<96x32xbf16>
    %c0_14 = arith.constant 0 : index
    %c0_15 = arith.constant 0 : index
    %c0_16 = arith.constant 0 : index
    %15 = vector.load %arg7[%c0_14, %c0_15, %c0_16] : memref<2x6x32xf32, #tpu.memory_space<vmem>>, vector<1x6x32xf32>
    %16 = vector.shape_cast %15 : vector<1x6x32xf32> to vector<6x32xf32>
    %c0_17 = arith.constant 0 : index
    %c0_18 = arith.constant 0 : index
    %c0_19 = arith.constant 0 : index
    %17 = vector.load %arg8[%c0_17, %c0_18, %c0_19] : memref<2x1x64xf32, #tpu.memory_space<vmem>>, vector<1x1x64xf32>
    %18 = vector.shape_cast %17 : vector<1x1x64xf32> to vector<1x64xf32>
    %19 = vector.extract_strided_slice %16 {offsets = [0, 0], sizes = [1, 32], strides = [1, 1]} : vector<6x32xf32> to vector<1x32xf32>
    %20 = vector.extract_strided_slice %16 {offsets = [1, 0], sizes = [1, 32], strides = [1, 1]} : vector<6x32xf32> to vector<1x32xf32>
    %cst_20 = arith.constant dense<0.000000e+00> : vector<16xf32>
    %21 = vector.multi_reduction <add>, %10, %cst_20 [1] : vector<16x32xf32> to vector<16xf32>
    %22 = vector.shape_cast %21 : vector<16xf32> to vector<16x1xf32>
    %cst_21 = arith.constant 3.200000e+01 : f32
    %23 = vector.broadcast %cst_21 : f32 to vector<16x1xf32>
    %24 = arith.divf %22, %23 : vector<16x1xf32>
    %25 = vector.broadcast %24 : vector<16x1xf32> to vector<16x32xf32>
    %26 = arith.subf %10, %25 : vector<16x32xf32>
    %27 = arith.mulf %26, %26 : vector<16x32xf32>
    %cst_22 = arith.constant dense<0.000000e+00> : vector<16xf32>
    %28 = vector.multi_reduction <add>, %27, %cst_22 [1] : vector<16x32xf32> to vector<16xf32>
    %29 = vector.shape_cast %28 : vector<16xf32> to vector<16x1xf32>
    %cst_23 = arith.constant 3.200000e+01 : f32
    %30 = vector.broadcast %cst_23 : f32 to vector<16x1xf32>
    %31 = arith.divf %29, %30 : vector<16x1xf32>
    %32 = vector.broadcast %24 : vector<16x1xf32> to vector<16x32xf32>
    %33 = arith.subf %10, %32 : vector<16x32xf32>
    %cst_24 = arith.constant 9.99999974E-6 : f32
    %34 = vector.broadcast %cst_24 : f32 to vector<16x1xf32>
    %35 = arith.addf %31, %34 : vector<16x1xf32>
    %36 = math.rsqrt %35 : vector<16x1xf32>
    %37 = vector.broadcast %36 : vector<16x1xf32> to vector<16x32xf32>
    %38 = arith.mulf %33, %37 : vector<16x32xf32>
    %39 = vector.broadcast %19 : vector<1x32xf32> to vector<16x32xf32>
    %40 = arith.mulf %38, %39 : vector<16x32xf32>
    %41 = vector.broadcast %20 : vector<1x32xf32> to vector<16x32xf32>
    %42 = arith.addf %40, %41 : vector<16x32xf32>
    %43 = arith.truncf %42 : vector<16x32xf32> to vector<16x32xbf16>
    %44 = vector.extract_strided_slice %12 {offsets = [0, 0], sizes = [32, 96], strides = [1, 1]} : vector<32x160xbf16> to vector<32x96xbf16>
    %cst_25 = arith.constant dense<0.000000e+00> : vector<16x96xf32>
    %45 = tpu.matmul %43, %44, %cst_25 {dimension_numbers = #tpu.dot_dimension_numbers<[1], [0], [0], [1], [0, 0, 1, 1], [], []>} : vector<16x32xbf16>, vector<32x96xbf16>, vector<16x96xf32> -> vector<16x96xf32>
    %46 = vector.extract_strided_slice %45 {offsets = [0, 0], sizes = [16, 8], strides = [1, 1]} : vector<16x96xf32> to vector<16x8xf32>
    %cst_26 = arith.constant 0.353553385 : f32
    %47 = vector.broadcast %cst_26 : f32 to vector<16x8xf32>
    %48 = arith.mulf %46, %47 : vector<16x8xf32>
    %49 = vector.extract_strided_slice %45 {offsets = [0, 32], sizes = [16, 8], strides = [1, 1]} : vector<16x96xf32> to vector<16x8xf32>
    %50 = vector.extract_strided_slice %45 {offsets = [0, 64], sizes = [16, 8], strides = [1, 1]} : vector<16x96xf32> to vector<16x8xf32>
    %51 = vector.shape_cast %48 : vector<16x8xf32> to vector<2x8x8xf32>
    %52 = arith.truncf %51 : vector<2x8x8xf32> to vector<2x8x8xbf16>
    %53 = vector.shape_cast %49 : vector<16x8xf32> to vector<2x8x8xf32>
    %54 = arith.truncf %53 : vector<2x8x8xf32> to vector<2x8x8xbf16>
    %55 = vector.shape_cast %50 : vector<16x8xf32> to vector<2x8x8xf32>
    %56 = arith.truncf %55 : vector<2x8x8xf32> to vector<2x8x8xbf16>
    "tpu.trace_start"() <{level = 10 : i32, message = "bqd,bkd->bqk"}> : () -> ()
    %cst_27 = arith.constant dense<0.000000e+00> : vector<2x8x8xf32>
    %57 = tpu.matmul %52, %54, %cst_27 {dimension_numbers = #tpu.dot_dimension_numbers<[2], [2], [1], [1], [0, 0, 0, 1, 1, 1], [0], [0]>} : vector<2x8x8xbf16>, vector<2x8x8xbf16>, vector<2x8x8xf32> -> vector<2x8x8xf32>
    %cst_28 = arith.constant -3.40282347E+38 : f32
    "tpu.trace_stop"() : () -> ()
    %58 = vector.broadcast %cst_28 : f32 to vector<2x8x8xf32>
    %59 = arith.select %9, %57, %58 : vector<2x8x8xi1>, vector<2x8x8xf32>
    %cst_29 = arith.constant dense<0xFF800000> : vector<2x8xf32>
    %60 = vector.multi_reduction <maximumf>, %59, %cst_29 [2] : vector<2x8x8xf32> to vector<2x8xf32>
    %61 = vector.shape_cast %60 : vector<2x8xf32> to vector<2x8x1xf32>
    %62 = vector.broadcast %61 : vector<2x8x1xf32> to vector<2x8x8xf32>
    %63 = arith.subf %59, %62 : vector<2x8x8xf32>
    %64 = math.exp %63 : vector<2x8x8xf32>
    %cst_30 = arith.constant dense<0.000000e+00> : vector<2x8xf32>
    %65 = vector.multi_reduction <add>, %64, %cst_30 [2] : vector<2x8x8xf32> to vector<2x8xf32>
    %66 = vector.shape_cast %65 : vector<2x8xf32> to vector<2x8x1xf32>
    %67 = tpu.reciprocal %66 {approx = true} : vector<2x8x1xf32> -> vector<2x8x1xf32>
    %68 = vector.broadcast %67 : vector<2x8x1xf32> to vector<2x8x8xf32>
    %69 = arith.mulf %64, %68 : vector<2x8x8xf32>
    %70 = arith.truncf %69 : vector<2x8x8xf32> to vector<2x8x8xbf16>
    "tpu.trace_start"() <{level = 10 : i32, message = "bqk,bkd->bqd"}> : () -> ()
    %cst_31 = arith.constant dense<0.000000e+00> : vector<2x8x8xf32>
    %71 = tpu.matmul %70, %56, %cst_31 {dimension_numbers = #tpu.dot_dimension_numbers<[2], [1], [1], [2], [0, 0, 0, 1, 1, 2], [0], [0]>} : vector<2x8x8xbf16>, vector<2x8x8xbf16>, vector<2x8x8xf32> -> vector<2x8x8xf32>
    "tpu.trace_stop"() : () -> ()
    %72 = vector.shape_cast %71 : vector<2x8x8xf32> to vector<16x8xf32>
    %73 = vector.extract_strided_slice %45 {offsets = [0, 8], sizes = [16, 8], strides = [1, 1]} : vector<16x96xf32> to vector<16x8xf32>
    %cst_32 = arith.constant 0.353553385 : f32
    %74 = vector.broadcast %cst_32 : f32 to vector<16x8xf32>
    %75 = arith.mulf %73, %74 : vector<16x8xf32>
    %76 = vector.extract_strided_slice %45 {offsets = [0, 40], sizes = [16, 8], strides = [1, 1]} : vector<16x96xf32> to vector<16x8xf32>
    %77 = vector.extract_strided_slice %45 {offsets = [0, 72], sizes = [16, 8], strides = [1, 1]} : vector<16x96xf32> to vector<16x8xf32>
    %78 = vector.shape_cast %75 : vector<16x8xf32> to vector<2x8x8xf32>
    %79 = arith.truncf %78 : vector<2x8x8xf32> to vector<2x8x8xbf16>
    %80 = vector.shape_cast %76 : vector<16x8xf32> to vector<2x8x8xf32>
    %81 = arith.truncf %80 : vector<2x8x8xf32> to vector<2x8x8xbf16>
    %82 = vector.shape_cast %77 : vector<16x8xf32> to vector<2x8x8xf32>
    %83 = arith.truncf %82 : vector<2x8x8xf32> to vector<2x8x8xbf16>
    "tpu.trace_start"() <{level = 10 : i32, message = "bqd,bkd->bqk"}> : () -> ()
    %cst_33 = arith.constant dense<0.000000e+00> : vector<2x8x8xf32>
    %84 = tpu.matmul %79, %81, %cst_33 {dimension_numbers = #tpu.dot_dimension_numbers<[2], [2], [1], [1], [0, 0, 0, 1, 1, 1], [0], [0]>} : vector<2x8x8xbf16>, vector<2x8x8xbf16>, vector<2x8x8xf32> -> vector<2x8x8xf32>
    %cst_34 = arith.constant -3.40282347E+38 : f32
    "tpu.trace_stop"() : () -> ()
    %85 = vector.broadcast %cst_34 : f32 to vector<2x8x8xf32>
    %86 = arith.select %9, %84, %85 : vector<2x8x8xi1>, vector<2x8x8xf32>
    %cst_35 = arith.constant dense<0xFF800000> : vector<2x8xf32>
    %87 = vector.multi_reduction <maximumf>, %86, %cst_35 [2] : vector<2x8x8xf32> to vector<2x8xf32>
    %88 = vector.shape_cast %87 : vector<2x8xf32> to vector<2x8x1xf32>
    %89 = vector.broadcast %88 : vector<2x8x1xf32> to vector<2x8x8xf32>
    %90 = arith.subf %86, %89 : vector<2x8x8xf32>
    %91 = math.exp %90 : vector<2x8x8xf32>
    %cst_36 = arith.constant dense<0.000000e+00> : vector<2x8xf32>
    %92 = vector.multi_reduction <add>, %91, %cst_36 [2] : vector<2x8x8xf32> to vector<2x8xf32>
    %93 = vector.shape_cast %92 : vector<2x8xf32> to vector<2x8x1xf32>
    %94 = tpu.reciprocal %93 {approx = true} : vector<2x8x1xf32> -> vector<2x8x1xf32>
    %95 = vector.broadcast %94 : vector<2x8x1xf32> to vector<2x8x8xf32>
    %96 = arith.mulf %91, %95 : vector<2x8x8xf32>
    %97 = arith.truncf %96 : vector<2x8x8xf32> to vector<2x8x8xbf16>
    "tpu.trace_start"() <{level = 10 : i32, message = "bqk,bkd->bqd"}> : () -> ()
    %cst_37 = arith.constant dense<0.000000e+00> : vector<2x8x8xf32>
    %98 = tpu.matmul %97, %83, %cst_37 {dimension_numbers = #tpu.dot_dimension_numbers<[2], [1], [1], [2], [0, 0, 0, 1, 1, 2], [0], [0]>} : vector<2x8x8xbf16>, vector<2x8x8xbf16>, vector<2x8x8xf32> -> vector<2x8x8xf32>
    "tpu.trace_stop"() : () -> ()
    %99 = vector.shape_cast %98 : vector<2x8x8xf32> to vector<16x8xf32>
    %100 = vector.extract_strided_slice %45 {offsets = [0, 16], sizes = [16, 8], strides = [1, 1]} : vector<16x96xf32> to vector<16x8xf32>
    %cst_38 = arith.constant 0.353553385 : f32
    %101 = vector.broadcast %cst_38 : f32 to vector<16x8xf32>
    %102 = arith.mulf %100, %101 : vector<16x8xf32>
    %103 = vector.extract_strided_slice %45 {offsets = [0, 48], sizes = [16, 8], strides = [1, 1]} : vector<16x96xf32> to vector<16x8xf32>
    %104 = vector.extract_strided_slice %45 {offsets = [0, 80], sizes = [16, 8], strides = [1, 1]} : vector<16x96xf32> to vector<16x8xf32>
    %105 = vector.shape_cast %102 : vector<16x8xf32> to vector<2x8x8xf32>
    %106 = arith.truncf %105 : vector<2x8x8xf32> to vector<2x8x8xbf16>
    %107 = vector.shape_cast %103 : vector<16x8xf32> to vector<2x8x8xf32>
    %108 = arith.truncf %107 : vector<2x8x8xf32> to vector<2x8x8xbf16>
    %109 = vector.shape_cast %104 : vector<16x8xf32> to vector<2x8x8xf32>
    %110 = arith.truncf %109 : vector<2x8x8xf32> to vector<2x8x8xbf16>
    "tpu.trace_start"() <{level = 10 : i32, message = "bqd,bkd->bqk"}> : () -> ()
    %cst_39 = arith.constant dense<0.000000e+00> : vector<2x8x8xf32>
    %111 = tpu.matmul %106, %108, %cst_39 {dimension_numbers = #tpu.dot_dimension_numbers<[2], [2], [1], [1], [0, 0, 0, 1, 1, 1], [0], [0]>} : vector<2x8x8xbf16>, vector<2x8x8xbf16>, vector<2x8x8xf32> -> vector<2x8x8xf32>
    %cst_40 = arith.constant -3.40282347E+38 : f32
    "tpu.trace_stop"() : () -> ()
    %112 = vector.broadcast %cst_40 : f32 to vector<2x8x8xf32>
    %113 = arith.select %9, %111, %112 : vector<2x8x8xi1>, vector<2x8x8xf32>
    %cst_41 = arith.constant dense<0xFF800000> : vector<2x8xf32>
    %114 = vector.multi_reduction <maximumf>, %113, %cst_41 [2] : vector<2x8x8xf32> to vector<2x8xf32>
    %115 = vector.shape_cast %114 : vector<2x8xf32> to vector<2x8x1xf32>
    %116 = vector.broadcast %115 : vector<2x8x1xf32> to vector<2x8x8xf32>
    %117 = arith.subf %113, %116 : vector<2x8x8xf32>
    %118 = math.exp %117 : vector<2x8x8xf32>
    %cst_42 = arith.constant dense<0.000000e+00> : vector<2x8xf32>
    %119 = vector.multi_reduction <add>, %118, %cst_42 [2] : vector<2x8x8xf32> to vector<2x8xf32>
    %120 = vector.shape_cast %119 : vector<2x8xf32> to vector<2x8x1xf32>
    %121 = tpu.reciprocal %120 {approx = true} : vector<2x8x1xf32> -> vector<2x8x1xf32>
    %122 = vector.broadcast %121 : vector<2x8x1xf32> to vector<2x8x8xf32>
    %123 = arith.mulf %118, %122 : vector<2x8x8xf32>
    %124 = arith.truncf %123 : vector<2x8x8xf32> to vector<2x8x8xbf16>
    "tpu.trace_start"() <{level = 10 : i32, message = "bqk,bkd->bqd"}> : () -> ()
    %cst_43 = arith.constant dense<0.000000e+00> : vector<2x8x8xf32>
    %125 = tpu.matmul %124, %110, %cst_43 {dimension_numbers = #tpu.dot_dimension_numbers<[2], [1], [1], [2], [0, 0, 0, 1, 1, 2], [0], [0]>} : vector<2x8x8xbf16>, vector<2x8x8xbf16>, vector<2x8x8xf32> -> vector<2x8x8xf32>
    "tpu.trace_stop"() : () -> ()
    %126 = vector.shape_cast %125 : vector<2x8x8xf32> to vector<16x8xf32>
    %127 = vector.extract_strided_slice %45 {offsets = [0, 24], sizes = [16, 8], strides = [1, 1]} : vector<16x96xf32> to vector<16x8xf32>
    %cst_44 = arith.constant 0.353553385 : f32
    %128 = vector.broadcast %cst_44 : f32 to vector<16x8xf32>
    %129 = arith.mulf %127, %128 : vector<16x8xf32>
    %130 = vector.extract_strided_slice %45 {offsets = [0, 56], sizes = [16, 8], strides = [1, 1]} : vector<16x96xf32> to vector<16x8xf32>
    %131 = vector.extract_strided_slice %45 {offsets = [0, 88], sizes = [16, 8], strides = [1, 1]} : vector<16x96xf32> to vector<16x8xf32>
    %132 = vector.shape_cast %129 : vector<16x8xf32> to vector<2x8x8xf32>
    %133 = arith.truncf %132 : vector<2x8x8xf32> to vector<2x8x8xbf16>
    %134 = vector.shape_cast %130 : vector<16x8xf32> to vector<2x8x8xf32>
    %135 = arith.truncf %134 : vector<2x8x8xf32> to vector<2x8x8xbf16>
    %136 = vector.shape_cast %131 : vector<16x8xf32> to vector<2x8x8xf32>
    %137 = arith.truncf %136 : vector<2x8x8xf32> to vector<2x8x8xbf16>
    "tpu.trace_start"() <{level = 10 : i32, message = "bqd,bkd->bqk"}> : () -> ()
    %cst_45 = arith.constant dense<0.000000e+00> : vector<2x8x8xf32>
    %138 = tpu.matmul %133, %135, %cst_45 {dimension_numbers = #tpu.dot_dimension_numbers<[2], [2], [1], [1], [0, 0, 0, 1, 1, 1], [0], [0]>} : vector<2x8x8xbf16>, vector<2x8x8xbf16>, vector<2x8x8xf32> -> vector<2x8x8xf32>
    %cst_46 = arith.constant -3.40282347E+38 : f32
    "tpu.trace_stop"() : () -> ()
    %139 = vector.broadcast %cst_46 : f32 to vector<2x8x8xf32>
    %140 = arith.select %9, %138, %139 : vector<2x8x8xi1>, vector<2x8x8xf32>
    %cst_47 = arith.constant dense<0xFF800000> : vector<2x8xf32>
    %141 = vector.multi_reduction <maximumf>, %140, %cst_47 [2] : vector<2x8x8xf32> to vector<2x8xf32>
    %142 = vector.shape_cast %141 : vector<2x8xf32> to vector<2x8x1xf32>
    %143 = vector.broadcast %142 : vector<2x8x1xf32> to vector<2x8x8xf32>
    %144 = arith.subf %140, %143 : vector<2x8x8xf32>
    %145 = math.exp %144 : vector<2x8x8xf32>
    %cst_48 = arith.constant dense<0.000000e+00> : vector<2x8xf32>
    %146 = vector.multi_reduction <add>, %145, %cst_48 [2] : vector<2x8x8xf32> to vector<2x8xf32>
    %147 = vector.shape_cast %146 : vector<2x8xf32> to vector<2x8x1xf32>
    %148 = tpu.reciprocal %147 {approx = true} : vector<2x8x1xf32> -> vector<2x8x1xf32>
    %149 = vector.broadcast %148 : vector<2x8x1xf32> to vector<2x8x8xf32>
    %150 = arith.mulf %145, %149 : vector<2x8x8xf32>
    %151 = arith.truncf %150 : vector<2x8x8xf32> to vector<2x8x8xbf16>
    "tpu.trace_start"() <{level = 10 : i32, message = "bqk,bkd->bqd"}> : () -> ()
    %cst_49 = arith.constant dense<0.000000e+00> : vector<2x8x8xf32>
    %152 = tpu.matmul %151, %137, %cst_49 {dimension_numbers = #tpu.dot_dimension_numbers<[2], [1], [1], [2], [0, 0, 0, 1, 1, 2], [0], [0]>} : vector<2x8x8xbf16>, vector<2x8x8xbf16>, vector<2x8x8xf32> -> vector<2x8x8xf32>
    "tpu.trace_stop"() : () -> ()
    %153 = vector.shape_cast %152 : vector<2x8x8xf32> to vector<16x8xf32>
    %154 = tpu.concatenate %72, %99, %126, %153 in 1 : vector<16x8xf32>, vector<16x8xf32>, vector<16x8xf32>, vector<16x8xf32> -> vector<16x32xf32>
    %155 = arith.truncf %154 : vector<16x32xf32> to vector<16x32xbf16>
    %156 = vector.extract_strided_slice %14 {offsets = [0, 0], sizes = [32, 32], strides = [1, 1]} : vector<96x32xbf16> to vector<32x32xbf16>
    %cst_50 = arith.constant dense<0.000000e+00> : vector<16x32xf32>
    %157 = tpu.matmul %155, %156, %cst_50 {dimension_numbers = #tpu.dot_dimension_numbers<[1], [0], [0], [1], [0, 0, 1, 1], [], []>} : vector<16x32xbf16>, vector<32x32xbf16>, vector<16x32xf32> -> vector<16x32xf32>
    %158 = arith.addf %10, %157 : vector<16x32xf32>
    %159 = vector.extract_strided_slice %16 {offsets = [4, 0], sizes = [1, 32], strides = [1, 1]} : vector<6x32xf32> to vector<1x32xf32>
    %160 = vector.broadcast %159 : vector<1x32xf32> to vector<16x32xf32>
    %161 = arith.addf %158, %160 : vector<16x32xf32>
    %162 = vector.extract_strided_slice %16 {offsets = [2, 0], sizes = [1, 32], strides = [1, 1]} : vector<6x32xf32> to vector<1x32xf32>
    %163 = vector.extract_strided_slice %16 {offsets = [3, 0], sizes = [1, 32], strides = [1, 1]} : vector<6x32xf32> to vector<1x32xf32>
    %cst_51 = arith.constant dense<0.000000e+00> : vector<16xf32>
    %164 = vector.multi_reduction <add>, %161, %cst_51 [1] : vector<16x32xf32> to vector<16xf32>
    %165 = vector.shape_cast %164 : vector<16xf32> to vector<16x1xf32>
    %cst_52 = arith.constant 3.200000e+01 : f32
    %166 = vector.broadcast %cst_52 : f32 to vector<16x1xf32>
    %167 = arith.divf %165, %166 : vector<16x1xf32>
    %168 = vector.broadcast %167 : vector<16x1xf32> to vector<16x32xf32>
    %169 = arith.subf %161, %168 : vector<16x32xf32>
    %170 = arith.mulf %169, %169 : vector<16x32xf32>
    %cst_53 = arith.constant dense<0.000000e+00> : vector<16xf32>
    %171 = vector.multi_reduction <add>, %170, %cst_53 [1] : vector<16x32xf32> to vector<16xf32>
    %172 = vector.shape_cast %171 : vector<16xf32> to vector<16x1xf32>
    %cst_54 = arith.constant 3.200000e+01 : f32
    %173 = vector.broadcast %cst_54 : f32 to vector<16x1xf32>
    %174 = arith.divf %172, %173 : vector<16x1xf32>
    %175 = vector.broadcast %167 : vector<16x1xf32> to vector<16x32xf32>
    %176 = arith.subf %161, %175 : vector<16x32xf32>
    %cst_55 = arith.constant 9.99999974E-6 : f32
    %177 = vector.broadcast %cst_55 : f32 to vector<16x1xf32>
    %178 = arith.addf %174, %177 : vector<16x1xf32>
    %179 = math.rsqrt %178 : vector<16x1xf32>
    %180 = vector.broadcast %179 : vector<16x1xf32> to vector<16x32xf32>
    %181 = arith.mulf %176, %180 : vector<16x32xf32>
    %182 = vector.broadcast %162 : vector<1x32xf32> to vector<16x32xf32>
    %183 = arith.mulf %181, %182 : vector<16x32xf32>
    %184 = vector.broadcast %163 : vector<1x32xf32> to vector<16x32xf32>
    %185 = arith.addf %183, %184 : vector<16x32xf32>
    %186 = arith.truncf %185 : vector<16x32xf32> to vector<16x32xbf16>
    %187 = vector.extract_strided_slice %12 {offsets = [0, 96], sizes = [32, 64], strides = [1, 1]} : vector<32x160xbf16> to vector<32x64xbf16>
    %cst_56 = arith.constant dense<0.000000e+00> : vector<16x64xf32>
    %188 = tpu.matmul %186, %187, %cst_56 {dimension_numbers = #tpu.dot_dimension_numbers<[1], [0], [0], [1], [0, 0, 1, 1], [], []>} : vector<16x32xbf16>, vector<32x64xbf16>, vector<16x64xf32> -> vector<16x64xf32>
    %189 = vector.broadcast %18 : vector<1x64xf32> to vector<16x64xf32>
    %190 = arith.addf %188, %189 : vector<16x64xf32>
    %cst_57 = arith.constant 5.000000e-01 : f32
    %191 = vector.broadcast %cst_57 : f32 to vector<16x64xf32>
    %192 = arith.mulf %191, %190 : vector<16x64xf32>
    %cst_58 = arith.constant 4.471500e-02 : f32
    %193 = vector.broadcast %cst_58 : f32 to vector<16x64xf32>
    %194 = arith.mulf %193, %190 : vector<16x64xf32>
    %195 = arith.mulf %194, %190 : vector<16x64xf32>
    %196 = arith.mulf %195, %190 : vector<16x64xf32>
    %197 = arith.addf %190, %196 : vector<16x64xf32>
    %cst_59 = arith.constant 0.797884583 : f32
    %198 = vector.broadcast %cst_59 : f32 to vector<16x64xf32>
    %199 = arith.mulf %198, %197 : vector<16x64xf32>
    %200 = math.tanh %199 : vector<16x64xf32>
    %cst_60 = arith.constant 1.000000e+00 : f32
    %201 = vector.broadcast %cst_60 : f32 to vector<16x64xf32>
    %202 = arith.addf %201, %200 : vector<16x64xf32>
    %203 = arith.mulf %192, %202 : vector<16x64xf32>
    %204 = arith.truncf %203 : vector<16x64xf32> to vector<16x64xbf16>
    %205 = vector.extract_strided_slice %14 {offsets = [32, 0], sizes = [64, 32], strides = [1, 1]} : vector<96x32xbf16> to vector<64x32xbf16>
    %cst_61 = arith.constant dense<0.000000e+00> : vector<16x32xf32>
    %206 = tpu.matmul %204, %205, %cst_61 {dimension_numbers = #tpu.dot_dimension_numbers<[1], [0], [0], [1], [0, 0, 1, 1], [], []>} : vector<16x64xbf16>, vector<64x32xbf16>, vector<16x32xf32> -> vector<16x32xf32>
    %207 = arith.addf %185, %206 : vector<16x32xf32>
    %208 = vector.extract_strided_slice %16 {offsets = [5, 0], sizes = [1, 32], strides = [1, 1]} : vector<6x32xf32> to vector<1x32xf32>
    %209 = vector.broadcast %208 : vector<1x32xf32> to vector<16x32xf32>
    %210 = arith.addf %207, %209 : vector<16x32xf32>
    %c1 = arith.constant 1 : index
    %c0_62 = arith.constant 0 : index
    %c0_63 = arith.constant 0 : index
    %211 = vector.load %arg5[%c1, %c0_62, %c0_63] : memref<2x32x160xbf16, #tpu.memory_space<vmem>>, vector<1x32x160xbf16>
    %212 = vector.shape_cast %211 : vector<1x32x160xbf16> to vector<32x160xbf16>
    %c1_64 = arith.constant 1 : index
    %c0_65 = arith.constant 0 : index
    %c0_66 = arith.constant 0 : index
    %213 = vector.load %arg6[%c1_64, %c0_65, %c0_66] : memref<2x96x32xbf16, #tpu.memory_space<vmem>>, vector<1x96x32xbf16>
    %214 = vector.shape_cast %213 : vector<1x96x32xbf16> to vector<96x32xbf16>
    %c1_67 = arith.constant 1 : index
    %c0_68 = arith.constant 0 : index
    %c0_69 = arith.constant 0 : index
    %215 = vector.load %arg7[%c1_67, %c0_68, %c0_69] : memref<2x6x32xf32, #tpu.memory_space<vmem>>, vector<1x6x32xf32>
    %216 = vector.shape_cast %215 : vector<1x6x32xf32> to vector<6x32xf32>
    %c1_70 = arith.constant 1 : index
    %c0_71 = arith.constant 0 : index
    %c0_72 = arith.constant 0 : index
    %217 = vector.load %arg8[%c1_70, %c0_71, %c0_72] : memref<2x1x64xf32, #tpu.memory_space<vmem>>, vector<1x1x64xf32>
    %218 = vector.shape_cast %217 : vector<1x1x64xf32> to vector<1x64xf32>
    %219 = vector.extract_strided_slice %216 {offsets = [0, 0], sizes = [1, 32], strides = [1, 1]} : vector<6x32xf32> to vector<1x32xf32>
    %220 = vector.extract_strided_slice %216 {offsets = [1, 0], sizes = [1, 32], strides = [1, 1]} : vector<6x32xf32> to vector<1x32xf32>
    %cst_73 = arith.constant dense<0.000000e+00> : vector<16xf32>
    %221 = vector.multi_reduction <add>, %210, %cst_73 [1] : vector<16x32xf32> to vector<16xf32>
    %222 = vector.shape_cast %221 : vector<16xf32> to vector<16x1xf32>
    %cst_74 = arith.constant 3.200000e+01 : f32
    %223 = vector.broadcast %cst_74 : f32 to vector<16x1xf32>
    %224 = arith.divf %222, %223 : vector<16x1xf32>
    %225 = vector.broadcast %224 : vector<16x1xf32> to vector<16x32xf32>
    %226 = arith.subf %210, %225 : vector<16x32xf32>
    %227 = arith.mulf %226, %226 : vector<16x32xf32>
    %cst_75 = arith.constant dense<0.000000e+00> : vector<16xf32>
    %228 = vector.multi_reduction <add>, %227, %cst_75 [1] : vector<16x32xf32> to vector<16xf32>
    %229 = vector.shape_cast %228 : vector<16xf32> to vector<16x1xf32>
    %cst_76 = arith.constant 3.200000e+01 : f32
    %230 = vector.broadcast %cst_76 : f32 to vector<16x1xf32>
    %231 = arith.divf %229, %230 : vector<16x1xf32>
    %232 = vector.broadcast %224 : vector<16x1xf32> to vector<16x32xf32>
    %233 = arith.subf %210, %232 : vector<16x32xf32>
    %cst_77 = arith.constant 9.99999974E-6 : f32
    %234 = vector.broadcast %cst_77 : f32 to vector<16x1xf32>
    %235 = arith.addf %231, %234 : vector<16x1xf32>
    %236 = math.rsqrt %235 : vector<16x1xf32>
    %237 = vector.broadcast %236 : vector<16x1xf32> to vector<16x32xf32>
    %238 = arith.mulf %233, %237 : vector<16x32xf32>
    %239 = vector.broadcast %219 : vector<1x32xf32> to vector<16x32xf32>
    %240 = arith.mulf %238, %239 : vector<16x32xf32>
    %241 = vector.broadcast %220 : vector<1x32xf32> to vector<16x32xf32>
    %242 = arith.addf %240, %241 : vector<16x32xf32>
    %243 = arith.truncf %242 : vector<16x32xf32> to vector<16x32xbf16>
    %244 = vector.extract_strided_slice %212 {offsets = [0, 0], sizes = [32, 96], strides = [1, 1]} : vector<32x160xbf16> to vector<32x96xbf16>
    %cst_78 = arith.constant dense<0.000000e+00> : vector<16x96xf32>
    %245 = tpu.matmul %243, %244, %cst_78 {dimension_numbers = #tpu.dot_dimension_numbers<[1], [0], [0], [1], [0, 0, 1, 1], [], []>} : vector<16x32xbf16>, vector<32x96xbf16>, vector<16x96xf32> -> vector<16x96xf32>
    %246 = vector.extract_strided_slice %245 {offsets = [0, 0], sizes = [16, 8], strides = [1, 1]} : vector<16x96xf32> to vector<16x8xf32>
    %cst_79 = arith.constant 0.353553385 : f32
    %247 = vector.broadcast %cst_79 : f32 to vector<16x8xf32>
    %248 = arith.mulf %246, %247 : vector<16x8xf32>
    %249 = vector.extract_strided_slice %245 {offsets = [0, 32], sizes = [16, 8], strides = [1, 1]} : vector<16x96xf32> to vector<16x8xf32>
    %250 = vector.extract_strided_slice %245 {offsets = [0, 64], sizes = [16, 8], strides = [1, 1]} : vector<16x96xf32> to vector<16x8xf32>
    %251 = vector.shape_cast %248 : vector<16x8xf32> to vector<2x8x8xf32>
    %252 = arith.truncf %251 : vector<2x8x8xf32> to vector<2x8x8xbf16>
    %253 = vector.shape_cast %249 : vector<16x8xf32> to vector<2x8x8xf32>
    %254 = arith.truncf %253 : vector<2x8x8xf32> to vector<2x8x8xbf16>
    %255 = vector.shape_cast %250 : vector<16x8xf32> to vector<2x8x8xf32>
    %256 = arith.truncf %255 : vector<2x8x8xf32> to vector<2x8x8xbf16>
    "tpu.trace_start"() <{level = 10 : i32, message = "bqd,bkd->bqk"}> : () -> ()
    %cst_80 = arith.constant dense<0.000000e+00> : vector<2x8x8xf32>
    %257 = tpu.matmul %252, %254, %cst_80 {dimension_numbers = #tpu.dot_dimension_numbers<[2], [2], [1], [1], [0, 0, 0, 1, 1, 1], [0], [0]>} : vector<2x8x8xbf16>, vector<2x8x8xbf16>, vector<2x8x8xf32> -> vector<2x8x8xf32>
    %cst_81 = arith.constant -3.40282347E+38 : f32
    "tpu.trace_stop"() : () -> ()
    %258 = vector.broadcast %cst_81 : f32 to vector<2x8x8xf32>
    %259 = arith.select %9, %257, %258 : vector<2x8x8xi1>, vector<2x8x8xf32>
    %cst_82 = arith.constant dense<0xFF800000> : vector<2x8xf32>
    %260 = vector.multi_reduction <maximumf>, %259, %cst_82 [2] : vector<2x8x8xf32> to vector<2x8xf32>
    %261 = vector.shape_cast %260 : vector<2x8xf32> to vector<2x8x1xf32>
    %262 = vector.broadcast %261 : vector<2x8x1xf32> to vector<2x8x8xf32>
    %263 = arith.subf %259, %262 : vector<2x8x8xf32>
    %264 = math.exp %263 : vector<2x8x8xf32>
    %cst_83 = arith.constant dense<0.000000e+00> : vector<2x8xf32>
    %265 = vector.multi_reduction <add>, %264, %cst_83 [2] : vector<2x8x8xf32> to vector<2x8xf32>
    %266 = vector.shape_cast %265 : vector<2x8xf32> to vector<2x8x1xf32>
    %267 = tpu.reciprocal %266 {approx = true} : vector<2x8x1xf32> -> vector<2x8x1xf32>
    %268 = vector.broadcast %267 : vector<2x8x1xf32> to vector<2x8x8xf32>
    %269 = arith.mulf %264, %268 : vector<2x8x8xf32>
    %270 = arith.truncf %269 : vector<2x8x8xf32> to vector<2x8x8xbf16>
    "tpu.trace_start"() <{level = 10 : i32, message = "bqk,bkd->bqd"}> : () -> ()
    %cst_84 = arith.constant dense<0.000000e+00> : vector<2x8x8xf32>
    %271 = tpu.matmul %270, %256, %cst_84 {dimension_numbers = #tpu.dot_dimension_numbers<[2], [1], [1], [2], [0, 0, 0, 1, 1, 2], [0], [0]>} : vector<2x8x8xbf16>, vector<2x8x8xbf16>, vector<2x8x8xf32> -> vector<2x8x8xf32>
    "tpu.trace_stop"() : () -> ()
    %272 = vector.shape_cast %271 : vector<2x8x8xf32> to vector<16x8xf32>
    %273 = vector.extract_strided_slice %245 {offsets = [0, 8], sizes = [16, 8], strides = [1, 1]} : vector<16x96xf32> to vector<16x8xf32>
    %cst_85 = arith.constant 0.353553385 : f32
    %274 = vector.broadcast %cst_85 : f32 to vector<16x8xf32>
    %275 = arith.mulf %273, %274 : vector<16x8xf32>
    %276 = vector.extract_strided_slice %245 {offsets = [0, 40], sizes = [16, 8], strides = [1, 1]} : vector<16x96xf32> to vector<16x8xf32>
    %277 = vector.extract_strided_slice %245 {offsets = [0, 72], sizes = [16, 8], strides = [1, 1]} : vector<16x96xf32> to vector<16x8xf32>
    %278 = vector.shape_cast %275 : vector<16x8xf32> to vector<2x8x8xf32>
    %279 = arith.truncf %278 : vector<2x8x8xf32> to vector<2x8x8xbf16>
    %280 = vector.shape_cast %276 : vector<16x8xf32> to vector<2x8x8xf32>
    %281 = arith.truncf %280 : vector<2x8x8xf32> to vector<2x8x8xbf16>
    %282 = vector.shape_cast %277 : vector<16x8xf32> to vector<2x8x8xf32>
    %283 = arith.truncf %282 : vector<2x8x8xf32> to vector<2x8x8xbf16>
    "tpu.trace_start"() <{level = 10 : i32, message = "bqd,bkd->bqk"}> : () -> ()
    %cst_86 = arith.constant dense<0.000000e+00> : vector<2x8x8xf32>
    %284 = tpu.matmul %279, %281, %cst_86 {dimension_numbers = #tpu.dot_dimension_numbers<[2], [2], [1], [1], [0, 0, 0, 1, 1, 1], [0], [0]>} : vector<2x8x8xbf16>, vector<2x8x8xbf16>, vector<2x8x8xf32> -> vector<2x8x8xf32>
    %cst_87 = arith.constant -3.40282347E+38 : f32
    "tpu.trace_stop"() : () -> ()
    %285 = vector.broadcast %cst_87 : f32 to vector<2x8x8xf32>
    %286 = arith.select %9, %284, %285 : vector<2x8x8xi1>, vector<2x8x8xf32>
    %cst_88 = arith.constant dense<0xFF800000> : vector<2x8xf32>
    %287 = vector.multi_reduction <maximumf>, %286, %cst_88 [2] : vector<2x8x8xf32> to vector<2x8xf32>
    %288 = vector.shape_cast %287 : vector<2x8xf32> to vector<2x8x1xf32>
    %289 = vector.broadcast %288 : vector<2x8x1xf32> to vector<2x8x8xf32>
    %290 = arith.subf %286, %289 : vector<2x8x8xf32>
    %291 = math.exp %290 : vector<2x8x8xf32>
    %cst_89 = arith.constant dense<0.000000e+00> : vector<2x8xf32>
    %292 = vector.multi_reduction <add>, %291, %cst_89 [2] : vector<2x8x8xf32> to vector<2x8xf32>
    %293 = vector.shape_cast %292 : vector<2x8xf32> to vector<2x8x1xf32>
    %294 = tpu.reciprocal %293 {approx = true} : vector<2x8x1xf32> -> vector<2x8x1xf32>
    %295 = vector.broadcast %294 : vector<2x8x1xf32> to vector<2x8x8xf32>
    %296 = arith.mulf %291, %295 : vector<2x8x8xf32>
    %297 = arith.truncf %296 : vector<2x8x8xf32> to vector<2x8x8xbf16>
    "tpu.trace_start"() <{level = 10 : i32, message = "bqk,bkd->bqd"}> : () -> ()
    %cst_90 = arith.constant dense<0.000000e+00> : vector<2x8x8xf32>
    %298 = tpu.matmul %297, %283, %cst_90 {dimension_numbers = #tpu.dot_dimension_numbers<[2], [1], [1], [2], [0, 0, 0, 1, 1, 2], [0], [0]>} : vector<2x8x8xbf16>, vector<2x8x8xbf16>, vector<2x8x8xf32> -> vector<2x8x8xf32>
    "tpu.trace_stop"() : () -> ()
    %299 = vector.shape_cast %298 : vector<2x8x8xf32> to vector<16x8xf32>
    %300 = vector.extract_strided_slice %245 {offsets = [0, 16], sizes = [16, 8], strides = [1, 1]} : vector<16x96xf32> to vector<16x8xf32>
    %cst_91 = arith.constant 0.353553385 : f32
    %301 = vector.broadcast %cst_91 : f32 to vector<16x8xf32>
    %302 = arith.mulf %300, %301 : vector<16x8xf32>
    %303 = vector.extract_strided_slice %245 {offsets = [0, 48], sizes = [16, 8], strides = [1, 1]} : vector<16x96xf32> to vector<16x8xf32>
    %304 = vector.extract_strided_slice %245 {offsets = [0, 80], sizes = [16, 8], strides = [1, 1]} : vector<16x96xf32> to vector<16x8xf32>
    %305 = vector.shape_cast %302 : vector<16x8xf32> to vector<2x8x8xf32>
    %306 = arith.truncf %305 : vector<2x8x8xf32> to vector<2x8x8xbf16>
    %307 = vector.shape_cast %303 : vector<16x8xf32> to vector<2x8x8xf32>
    %308 = arith.truncf %307 : vector<2x8x8xf32> to vector<2x8x8xbf16>
    %309 = vector.shape_cast %304 : vector<16x8xf32> to vector<2x8x8xf32>
    %310 = arith.truncf %309 : vector<2x8x8xf32> to vector<2x8x8xbf16>
    "tpu.trace_start"() <{level = 10 : i32, message = "bqd,bkd->bqk"}> : () -> ()
    %cst_92 = arith.constant dense<0.000000e+00> : vector<2x8x8xf32>
    %311 = tpu.matmul %306, %308, %cst_92 {dimension_numbers = #tpu.dot_dimension_numbers<[2], [2], [1], [1], [0, 0, 0, 1, 1, 1], [0], [0]>} : vector<2x8x8xbf16>, vector<2x8x8xbf16>, vector<2x8x8xf32> -> vector<2x8x8xf32>
    %cst_93 = arith.constant -3.40282347E+38 : f32
    "tpu.trace_stop"() : () -> ()
    %312 = vector.broadcast %cst_93 : f32 to vector<2x8x8xf32>
    %313 = arith.select %9, %311, %312 : vector<2x8x8xi1>, vector<2x8x8xf32>
    %cst_94 = arith.constant dense<0xFF800000> : vector<2x8xf32>
    %314 = vector.multi_reduction <maximumf>, %313, %cst_94 [2] : vector<2x8x8xf32> to vector<2x8xf32>
    %315 = vector.shape_cast %314 : vector<2x8xf32> to vector<2x8x1xf32>
    %316 = vector.broadcast %315 : vector<2x8x1xf32> to vector<2x8x8xf32>
    %317 = arith.subf %313, %316 : vector<2x8x8xf32>
    %318 = math.exp %317 : vector<2x8x8xf32>
    %cst_95 = arith.constant dense<0.000000e+00> : vector<2x8xf32>
    %319 = vector.multi_reduction <add>, %318, %cst_95 [2] : vector<2x8x8xf32> to vector<2x8xf32>
    %320 = vector.shape_cast %319 : vector<2x8xf32> to vector<2x8x1xf32>
    %321 = tpu.reciprocal %320 {approx = true} : vector<2x8x1xf32> -> vector<2x8x1xf32>
    %322 = vector.broadcast %321 : vector<2x8x1xf32> to vector<2x8x8xf32>
    %323 = arith.mulf %318, %322 : vector<2x8x8xf32>
    %324 = arith.truncf %323 : vector<2x8x8xf32> to vector<2x8x8xbf16>
    "tpu.trace_start"() <{level = 10 : i32, message = "bqk,bkd->bqd"}> : () -> ()
    %cst_96 = arith.constant dense<0.000000e+00> : vector<2x8x8xf32>
    %325 = tpu.matmul %324, %310, %cst_96 {dimension_numbers = #tpu.dot_dimension_numbers<[2], [1], [1], [2], [0, 0, 0, 1, 1, 2], [0], [0]>} : vector<2x8x8xbf16>, vector<2x8x8xbf16>, vector<2x8x8xf32> -> vector<2x8x8xf32>
    "tpu.trace_stop"() : () -> ()
    %326 = vector.shape_cast %325 : vector<2x8x8xf32> to vector<16x8xf32>
    %327 = vector.extract_strided_slice %245 {offsets = [0, 24], sizes = [16, 8], strides = [1, 1]} : vector<16x96xf32> to vector<16x8xf32>
    %cst_97 = arith.constant 0.353553385 : f32
    %328 = vector.broadcast %cst_97 : f32 to vector<16x8xf32>
    %329 = arith.mulf %327, %328 : vector<16x8xf32>
    %330 = vector.extract_strided_slice %245 {offsets = [0, 56], sizes = [16, 8], strides = [1, 1]} : vector<16x96xf32> to vector<16x8xf32>
    %331 = vector.extract_strided_slice %245 {offsets = [0, 88], sizes = [16, 8], strides = [1, 1]} : vector<16x96xf32> to vector<16x8xf32>
    %332 = vector.shape_cast %329 : vector<16x8xf32> to vector<2x8x8xf32>
    %333 = arith.truncf %332 : vector<2x8x8xf32> to vector<2x8x8xbf16>
    %334 = vector.shape_cast %330 : vector<16x8xf32> to vector<2x8x8xf32>
    %335 = arith.truncf %334 : vector<2x8x8xf32> to vector<2x8x8xbf16>
    %336 = vector.shape_cast %331 : vector<16x8xf32> to vector<2x8x8xf32>
    %337 = arith.truncf %336 : vector<2x8x8xf32> to vector<2x8x8xbf16>
    "tpu.trace_start"() <{level = 10 : i32, message = "bqd,bkd->bqk"}> : () -> ()
    %cst_98 = arith.constant dense<0.000000e+00> : vector<2x8x8xf32>
    %338 = tpu.matmul %333, %335, %cst_98 {dimension_numbers = #tpu.dot_dimension_numbers<[2], [2], [1], [1], [0, 0, 0, 1, 1, 1], [0], [0]>} : vector<2x8x8xbf16>, vector<2x8x8xbf16>, vector<2x8x8xf32> -> vector<2x8x8xf32>
    %cst_99 = arith.constant -3.40282347E+38 : f32
    "tpu.trace_stop"() : () -> ()
    %339 = vector.broadcast %cst_99 : f32 to vector<2x8x8xf32>
    %340 = arith.select %9, %338, %339 : vector<2x8x8xi1>, vector<2x8x8xf32>
    %cst_100 = arith.constant dense<0xFF800000> : vector<2x8xf32>
    %341 = vector.multi_reduction <maximumf>, %340, %cst_100 [2] : vector<2x8x8xf32> to vector<2x8xf32>
    %342 = vector.shape_cast %341 : vector<2x8xf32> to vector<2x8x1xf32>
    %343 = vector.broadcast %342 : vector<2x8x1xf32> to vector<2x8x8xf32>
    %344 = arith.subf %340, %343 : vector<2x8x8xf32>
    %345 = math.exp %344 : vector<2x8x8xf32>
    %cst_101 = arith.constant dense<0.000000e+00> : vector<2x8xf32>
    %346 = vector.multi_reduction <add>, %345, %cst_101 [2] : vector<2x8x8xf32> to vector<2x8xf32>
    %347 = vector.shape_cast %346 : vector<2x8xf32> to vector<2x8x1xf32>
    %348 = tpu.reciprocal %347 {approx = true} : vector<2x8x1xf32> -> vector<2x8x1xf32>
    %349 = vector.broadcast %348 : vector<2x8x1xf32> to vector<2x8x8xf32>
    %350 = arith.mulf %345, %349 : vector<2x8x8xf32>
    %351 = arith.truncf %350 : vector<2x8x8xf32> to vector<2x8x8xbf16>
    "tpu.trace_start"() <{level = 10 : i32, message = "bqk,bkd->bqd"}> : () -> ()
    %cst_102 = arith.constant dense<0.000000e+00> : vector<2x8x8xf32>
    %352 = tpu.matmul %351, %337, %cst_102 {dimension_numbers = #tpu.dot_dimension_numbers<[2], [1], [1], [2], [0, 0, 0, 1, 1, 2], [0], [0]>} : vector<2x8x8xbf16>, vector<2x8x8xbf16>, vector<2x8x8xf32> -> vector<2x8x8xf32>
    "tpu.trace_stop"() : () -> ()
    %353 = vector.shape_cast %352 : vector<2x8x8xf32> to vector<16x8xf32>
    %354 = tpu.concatenate %272, %299, %326, %353 in 1 : vector<16x8xf32>, vector<16x8xf32>, vector<16x8xf32>, vector<16x8xf32> -> vector<16x32xf32>
    %355 = arith.truncf %354 : vector<16x32xf32> to vector<16x32xbf16>
    %356 = vector.extract_strided_slice %214 {offsets = [0, 0], sizes = [32, 32], strides = [1, 1]} : vector<96x32xbf16> to vector<32x32xbf16>
    %cst_103 = arith.constant dense<0.000000e+00> : vector<16x32xf32>
    %357 = tpu.matmul %355, %356, %cst_103 {dimension_numbers = #tpu.dot_dimension_numbers<[1], [0], [0], [1], [0, 0, 1, 1], [], []>} : vector<16x32xbf16>, vector<32x32xbf16>, vector<16x32xf32> -> vector<16x32xf32>
    %358 = arith.addf %210, %357 : vector<16x32xf32>
    %359 = vector.extract_strided_slice %216 {offsets = [4, 0], sizes = [1, 32], strides = [1, 1]} : vector<6x32xf32> to vector<1x32xf32>
    %360 = vector.broadcast %359 : vector<1x32xf32> to vector<16x32xf32>
    %361 = arith.addf %358, %360 : vector<16x32xf32>
    %362 = vector.extract_strided_slice %216 {offsets = [2, 0], sizes = [1, 32], strides = [1, 1]} : vector<6x32xf32> to vector<1x32xf32>
    %363 = vector.extract_strided_slice %216 {offsets = [3, 0], sizes = [1, 32], strides = [1, 1]} : vector<6x32xf32> to vector<1x32xf32>
    %cst_104 = arith.constant dense<0.000000e+00> : vector<16xf32>
    %364 = vector.multi_reduction <add>, %361, %cst_104 [1] : vector<16x32xf32> to vector<16xf32>
    %365 = vector.shape_cast %364 : vector<16xf32> to vector<16x1xf32>
    %cst_105 = arith.constant 3.200000e+01 : f32
    %366 = vector.broadcast %cst_105 : f32 to vector<16x1xf32>
    %367 = arith.divf %365, %366 : vector<16x1xf32>
    %368 = vector.broadcast %367 : vector<16x1xf32> to vector<16x32xf32>
    %369 = arith.subf %361, %368 : vector<16x32xf32>
    %370 = arith.mulf %369, %369 : vector<16x32xf32>
    %cst_106 = arith.constant dense<0.000000e+00> : vector<16xf32>
    %371 = vector.multi_reduction <add>, %370, %cst_106 [1] : vector<16x32xf32> to vector<16xf32>
    %372 = vector.shape_cast %371 : vector<16xf32> to vector<16x1xf32>
    %cst_107 = arith.constant 3.200000e+01 : f32
    %373 = vector.broadcast %cst_107 : f32 to vector<16x1xf32>
    %374 = arith.divf %372, %373 : vector<16x1xf32>
    %375 = vector.broadcast %367 : vector<16x1xf32> to vector<16x32xf32>
    %376 = arith.subf %361, %375 : vector<16x32xf32>
    %cst_108 = arith.constant 9.99999974E-6 : f32
    %377 = vector.broadcast %cst_108 : f32 to vector<16x1xf32>
    %378 = arith.addf %374, %377 : vector<16x1xf32>
    %379 = math.rsqrt %378 : vector<16x1xf32>
    %380 = vector.broadcast %379 : vector<16x1xf32> to vector<16x32xf32>
    %381 = arith.mulf %376, %380 : vector<16x32xf32>
    %382 = vector.broadcast %362 : vector<1x32xf32> to vector<16x32xf32>
    %383 = arith.mulf %381, %382 : vector<16x32xf32>
    %384 = vector.broadcast %363 : vector<1x32xf32> to vector<16x32xf32>
    %385 = arith.addf %383, %384 : vector<16x32xf32>
    %386 = arith.truncf %385 : vector<16x32xf32> to vector<16x32xbf16>
    %387 = vector.extract_strided_slice %212 {offsets = [0, 96], sizes = [32, 64], strides = [1, 1]} : vector<32x160xbf16> to vector<32x64xbf16>
    %cst_109 = arith.constant dense<0.000000e+00> : vector<16x64xf32>
    %388 = tpu.matmul %386, %387, %cst_109 {dimension_numbers = #tpu.dot_dimension_numbers<[1], [0], [0], [1], [0, 0, 1, 1], [], []>} : vector<16x32xbf16>, vector<32x64xbf16>, vector<16x64xf32> -> vector<16x64xf32>
    %389 = vector.broadcast %218 : vector<1x64xf32> to vector<16x64xf32>
    %390 = arith.addf %388, %389 : vector<16x64xf32>
    %cst_110 = arith.constant 5.000000e-01 : f32
    %391 = vector.broadcast %cst_110 : f32 to vector<16x64xf32>
    %392 = arith.mulf %391, %390 : vector<16x64xf32>
    %cst_111 = arith.constant 4.471500e-02 : f32
    %393 = vector.broadcast %cst_111 : f32 to vector<16x64xf32>
    %394 = arith.mulf %393, %390 : vector<16x64xf32>
    %395 = arith.mulf %394, %390 : vector<16x64xf32>
    %396 = arith.mulf %395, %390 : vector<16x64xf32>
    %397 = arith.addf %390, %396 : vector<16x64xf32>
    %cst_112 = arith.constant 0.797884583 : f32
    %398 = vector.broadcast %cst_112 : f32 to vector<16x64xf32>
    %399 = arith.mulf %398, %397 : vector<16x64xf32>
    %400 = math.tanh %399 : vector<16x64xf32>
    %cst_113 = arith.constant 1.000000e+00 : f32
    %401 = vector.broadcast %cst_113 : f32 to vector<16x64xf32>
    %402 = arith.addf %401, %400 : vector<16x64xf32>
    %403 = arith.mulf %392, %402 : vector<16x64xf32>
    %404 = arith.truncf %403 : vector<16x64xf32> to vector<16x64xbf16>
    %405 = vector.extract_strided_slice %214 {offsets = [32, 0], sizes = [64, 32], strides = [1, 1]} : vector<96x32xbf16> to vector<64x32xbf16>
    %cst_114 = arith.constant dense<0.000000e+00> : vector<16x32xf32>
    %406 = tpu.matmul %404, %405, %cst_114 {dimension_numbers = #tpu.dot_dimension_numbers<[1], [0], [0], [1], [0, 0, 1, 1], [], []>} : vector<16x64xbf16>, vector<64x32xbf16>, vector<16x32xf32> -> vector<16x32xf32>
    %407 = arith.addf %385, %406 : vector<16x32xf32>
    %408 = vector.extract_strided_slice %216 {offsets = [5, 0], sizes = [1, 32], strides = [1, 1]} : vector<6x32xf32> to vector<1x32xf32>
    %409 = vector.broadcast %408 : vector<1x32xf32> to vector<16x32xf32>
    %410 = arith.addf %407, %409 : vector<16x32xf32>
    %c0_115 = arith.constant 0 : index
    %c0_116 = arith.constant 0 : index
    %411 = vector.load %arg11[%c0_115, %c0_116] : memref<16x32xf32, #tpu.memory_space<vmem>>, vector<16x32xf32>
    tpu.vector_store %arg11[%c0_115, %c0_116], %410 {strides = array<i32>} : memref<16x32xf32, #tpu.memory_space<vmem>>, vector<16x32xf32>,
    %c0_i32_117 = arith.constant 0 : i32
    %412 = arith.cmpi eq, %arg1, %c0_i32_117 : i32
    %413 = arith.extui %412 : i1 to i32
    %c0_i32_118 = arith.constant 0 : i32
    %414 = arith.cmpi ne, %413, %c0_i32_118 : i32
    scf.if %414 {
      %c0_119 = arith.constant 0 : index
      %c0_120 = arith.constant 0 : index
      %415 = vector.load %arg9[%c0_119, %c0_120] : memref<4x32xf32, #tpu.memory_space<vmem>>, vector<4x32xf32>
      %416 = vector.extract_strided_slice %415 {offsets = [0, 0], sizes = [1, 32], strides = [1, 1]} : vector<4x32xf32> to vector<1x32xf32>
      %417 = vector.extract_strided_slice %415 {offsets = [1, 0], sizes = [1, 32], strides = [1, 1]} : vector<4x32xf32> to vector<1x32xf32>
      %cst_121 = arith.constant dense<0.000000e+00> : vector<16xf32>
      %418 = vector.multi_reduction <add>, %410, %cst_121 [1] : vector<16x32xf32> to vector<16xf32>
      %419 = vector.shape_cast %418 : vector<16xf32> to vector<16x1xf32>
      %cst_122 = arith.constant 3.200000e+01 : f32
      %420 = vector.broadcast %cst_122 : f32 to vector<16x1xf32>
      %421 = arith.divf %419, %420 : vector<16x1xf32>
      %422 = vector.broadcast %421 : vector<16x1xf32> to vector<16x32xf32>
      %423 = arith.subf %410, %422 : vector<16x32xf32>
      %424 = arith.mulf %423, %423 : vector<16x32xf32>
      %cst_123 = arith.constant dense<0.000000e+00> : vector<16xf32>
      %425 = vector.multi_reduction <add>, %424, %cst_123 [1] : vector<16x32xf32> to vector<16xf32>
      %426 = vector.shape_cast %425 : vector<16xf32> to vector<16x1xf32>
      %cst_124 = arith.constant 3.200000e+01 : f32
      %427 = vector.broadcast %cst_124 : f32 to vector<16x1xf32>
      %428 = arith.divf %426, %427 : vector<16x1xf32>
      %429 = vector.broadcast %421 : vector<16x1xf32> to vector<16x32xf32>
      %430 = arith.subf %410, %429 : vector<16x32xf32>
      %cst_125 = arith.constant 9.99999974E-6 : f32
      %431 = vector.broadcast %cst_125 : f32 to vector<16x1xf32>
      %432 = arith.addf %428, %431 : vector<16x1xf32>
      %433 = math.rsqrt %432 : vector<16x1xf32>
      %434 = vector.broadcast %433 : vector<16x1xf32> to vector<16x32xf32>
      %435 = arith.mulf %430, %434 : vector<16x32xf32>
      %436 = vector.broadcast %416 : vector<1x32xf32> to vector<16x32xf32>
      %437 = arith.mulf %435, %436 : vector<16x32xf32>
      %438 = vector.broadcast %417 : vector<1x32xf32> to vector<16x32xf32>
      %439 = arith.addf %437, %438 : vector<16x32xf32>
      %440 = vector.shape_cast %439 : vector<16x32xf32> to vector<2x8x32xf32>
      %441 = vector.extract_strided_slice %415 {offsets = [2, 0], sizes = [1, 32], strides = [1, 1]} : vector<4x32xf32> to vector<1x32xf32>
      %442 = vector.shape_cast %441 : vector<1x32xf32> to vector<1x1x32xf32>
      %443 = vector.broadcast %442 : vector<1x1x32xf32> to vector<2x8x32xf32>
      %444 = arith.mulf %440, %443 : vector<2x8x32xf32>
      %cst_126 = arith.constant dense<0.000000e+00> : vector<2x8xf32>
      %445 = vector.multi_reduction <add>, %444, %cst_126 [2] : vector<2x8x32xf32> to vector<2x8xf32>
      %446 = vector.shape_cast %445 : vector<2x8xf32> to vector<2x8x1xf32>
      %447 = vector.extract_strided_slice %415 {offsets = [3, 0], sizes = [1, 1], strides = [1, 1]} : vector<4x32xf32> to vector<1x1xf32>
      %448 = vector.shape_cast %447 : vector<1x1xf32> to vector<1x1x1xf32>
      %449 = vector.broadcast %448 : vector<1x1x1xf32> to vector<2x8x1xf32>
      %450 = arith.addf %446, %449 : vector<2x8x1xf32>
      %cst_127 = arith.constant dense<0xFF800000> : vector<2x1xf32>
      %451 = vector.multi_reduction <maximumf>, %450, %cst_127 [1] : vector<2x8x1xf32> to vector<2x1xf32>
      %452 = vector.shape_cast %451 : vector<2x1xf32> to vector<2x1x1xf32>
      %453 = vector.broadcast %452 : vector<2x1x1xf32> to vector<2x8x1xf32>
      %454 = arith.subf %450, %453 : vector<2x8x1xf32>
      %455 = math.exp %454 : vector<2x8x1xf32>
      %cst_128 = arith.constant dense<0.000000e+00> : vector<2x1xf32>
      %456 = vector.multi_reduction <add>, %455, %cst_128 [1] : vector<2x8x1xf32> to vector<2x1xf32>
      %457 = vector.shape_cast %456 : vector<2x1xf32> to vector<2x1x1xf32>
      %458 = vector.broadcast %457 : vector<2x1x1xf32> to vector<2x8x1xf32>
      %459 = arith.divf %455, %458 : vector<2x8x1xf32>
      %460 = vector.broadcast %459 : vector<2x8x1xf32> to vector<2x8x32xf32>
      %461 = arith.mulf %460, %440 : vector<2x8x32xf32>
      %cst_129 = arith.constant dense<0.000000e+00> : vector<2x32xf32>
      %462 = vector.multi_reduction <add>, %461, %cst_129 [1] : vector<2x8x32xf32> to vector<2x32xf32>
      %c0_130 = arith.constant 0 : index
      %c0_131 = arith.constant 0 : index
      %463 = vector.load %arg10[%c0_130, %c0_131] : memref<2x32xf32, #tpu.memory_space<vmem>>, vector<2x32xf32>
      tpu.vector_store %arg10[%c0_130, %c0_131], %462 {strides = array<i32>} : memref<2x32xf32, #tpu.memory_space<vmem>>, vector<2x32xf32>,
    } else {
    }
    return
  }
  func.func @transform_0(%arg0: i32, %arg1: i32) -> (i32, i32, i32) {
    %c0_i32 = arith.constant 0 : i32
    %c0_i32_0 = arith.constant 0 : i32
    %c0_i32_1 = arith.constant 0 : i32
    return %arg0, %c0_i32, %c0_i32_0 : i32, i32, i32
  }
  func.func @transform_1(%arg0: i32, %arg1: i32) -> (i32, i32, i32) {
    %c0_i32 = arith.constant 0 : i32
    %c0_i32_0 = arith.constant 0 : i32
    %c0_i32_1 = arith.constant 0 : i32
    return %arg0, %c0_i32, %c0_i32_0 : i32, i32, i32
  }
  func.func @transform_2(%arg0: i32, %arg1: i32) -> (i32, i32, i32) {
    %c0_i32 = arith.constant 0 : i32
    %c0_i32_0 = arith.constant 0 : i32
    %c0_i32_1 = arith.constant 0 : i32
    return %arg0, %c0_i32, %c0_i32_0 : i32, i32, i32
  }
  func.func @transform_3(%arg0: i32, %arg1: i32) -> (i32, i32, i32) {
    %c0_i32 = arith.constant 0 : i32
    %c0_i32_0 = arith.constant 0 : i32
    %c0_i32_1 = arith.constant 0 : i32
    %c0_i32_2 = arith.constant 0 : i32
    return %c0_i32, %c0_i32_0, %c0_i32_1 : i32, i32, i32
  }
  func.func @transform_4(%arg0: i32, %arg1: i32) -> (i32, i32, i32) {
    %c0_i32 = arith.constant 0 : i32
    %c0_i32_0 = arith.constant 0 : i32
    %c0_i32_1 = arith.constant 0 : i32
    %c0_i32_2 = arith.constant 0 : i32
    return %c0_i32, %c0_i32_0, %c0_i32_1 : i32, i32, i32
  }
  func.func @transform_5(%arg0: i32, %arg1: i32) -> (i32, i32, i32) {
    %c0_i32 = arith.constant 0 : i32
    %c0_i32_0 = arith.constant 0 : i32
    %c0_i32_1 = arith.constant 0 : i32
    %c0_i32_2 = arith.constant 0 : i32
    return %c0_i32, %c0_i32_0, %c0_i32_1 : i32, i32, i32
  }
  func.func @transform_6(%arg0: i32, %arg1: i32) -> (i32, i32, i32) {
    %c0_i32 = arith.constant 0 : i32
    %c0_i32_0 = arith.constant 0 : i32
    %c0_i32_1 = arith.constant 0 : i32
    %c0_i32_2 = arith.constant 0 : i32
    return %c0_i32, %c0_i32_0, %c0_i32_1 : i32, i32, i32
  }
  func.func @transform_7(%arg0: i32, %arg1: i32) -> (i32, i32) {
    %c0_i32 = arith.constant 0 : i32
    %c0_i32_0 = arith.constant 0 : i32
    %c0_i32_1 = arith.constant 0 : i32
    return %c0_i32, %c0_i32_0 : i32, i32
  }
  func.func @transform_8(%arg0: i32, %arg1: i32) -> (i32, i32) {
    %c0_i32 = arith.constant 0 : i32
    %c0_i32_0 = arith.constant 0 : i32
    return %arg0, %c0_i32 : i32, i32
  }
}

</mosaic_0001>

<llo_original>
// kernel: tpu_custom_call.1
$region0: #{tpu_custom_call.1}
  #allocation0 [shape = 'u32[]', space=smem, size = 0x4, offset = 0x4, fixed_abs, tag = 'smem constant byte address 0x4 - core index']
  #allocation1 [shape = 'u32[72,128]{1,0:T(1,128)}', space=vmem, size = 0x9000, scoped, tag = 'internal scratch']
  #allocation2 [shape = 'f32[16,32]{1,0:T(8,128)}', space=vmem, size = 0x2000, scoped, tag = 'scratch operand']
  %s0 = inlined_call_operand.vmem [shape: f32[2,8,32], index: 0, kind: input, shape index: {}]
  %s1 = inlined_call_operand.vmem [shape: f32[2,8,1], index: 1, kind: input, shape index: {}]
  %s2 = inlined_call_operand.vmem [shape: f32[2,1,8], index: 2, kind: input, shape index: {}]
  %s3 = inlined_call_operand.vmem [shape: bf16[2,32,160], index: 3, kind: input, shape index: {}]
  %s4 = inlined_call_operand.vmem [shape: bf16[2,96,32], index: 4, kind: input, shape index: {}]
  %s5 = inlined_call_operand.vmem [shape: f32[2,6,32], index: 5, kind: input, shape index: {}]
  %s6 = inlined_call_operand.vmem [shape: f32[2,1,64], index: 6, kind: input, shape index: {}]
  %s7 = inlined_call_operand.vmem [shape: f32[4,32], index: 7, kind: input, shape index: {}]
  %s8 = inlined_call_operand.hbm [shape: f32[2,32], index: 8, kind: output, shape index: {}]
  %s9 = sld [smem:[#allocation0]]
  $region50: #{tpu_custom_call.1} parent=0
    _
  %s11 = ssub.s32 1, %s9
  %s12 = scalar_select 0, %s11, %s9
  $region1: #{tpu_custom_call.1} parent=0
    #allocation3 [shape = 'u8[1024]{0}', space=vmem, size = 0x400, scoped, tag = 'output window, operand 0, single buffered']
    #allocation4 [shape = 's32[1]{0}', space=sflag, size = 0x4, scoped, tag = 'scoped memory for tpu_custom_call.1']
    %13 = vsyncpa [#allocation4], 0
    // Predicated region
    $region2: #{tpu_custom_call.1} parent=1 // pred_check
      _
    $region3: #{tpu_custom_call.1} parent=1 // pred_check_branch
      %15 = sbr.rel (0) target = $region5
    $region4: #{tpu_custom_call.1} parent=1 // pred_region
      _
    $region5: #{tpu_custom_call.1} parent=1 // pred_fallthru
      _
    // Predicated region
    $region6: #{tpu_custom_call.1} parent=1 // pred_check
      _
    $region7: #{tpu_custom_call.1} parent=1 // pred_check_branch
      %17 = sbr.rel (0) target = $region9
    $region8: #{tpu_custom_call.1} parent=1 // pred_region
      _
    $region9: #{tpu_custom_call.1} parent=1 // pred_fallthru
      _
    // Predicated region
    $region10: #{tpu_custom_call.1} parent=1 // pred_check
      _
    $region11: #{tpu_custom_call.1} parent=1 // pred_check_branch
      %19 = sbr.rel (0) target = $region13
    $region12: #{tpu_custom_call.1} parent=1 // pred_region
      _
    $region13: #{tpu_custom_call.1} parent=1 // pred_fallthru
      _
    // Predicated region
    $region14: #{tpu_custom_call.1} parent=1 // pred_check
      _
    $region15: #{tpu_custom_call.1} parent=1 // pred_check_branch
      %21 = sbr.rel (0) target = $region17
    $region16: #{tpu_custom_call.1} parent=1 // pred_region
      _
    $region17: #{tpu_custom_call.1} parent=1 // pred_fallthru
      _
    // Predicated region
    $region18: #{tpu_custom_call.1} parent=1 // pred_check
      _
    $region19: #{tpu_custom_call.1} parent=1 // pred_check_branch
      %23 = sbr.rel (0) target = $region21
    $region20: #{tpu_custom_call.1} parent=1 // pred_region
      _
    $region21: #{tpu_custom_call.1} parent=1 // pred_fallthru
      _
    // Predicated region
    $region22: #{tpu_custom_call.1} parent=1 // pred_check
      _
    $region23: #{tpu_custom_call.1} parent=1 // pred_check_branch
      %25 = sbr.rel (0) target = $region25
    $region24: #{tpu_custom_call.1} parent=1 // pred_region
      _
    $region25: #{tpu_custom_call.1} parent=1 // pred_fallthru
      _
    // Predicated region
    $region26: #{tpu_custom_call.1} parent=1 // pred_check
      _
    $region27: #{tpu_custom_call.1} parent=1 // pred_check_branch
      %27 = sbr.rel (0) target = $region29
    $region28: #{tpu_custom_call.1} parent=1 // pred_region
      _
    $region29: #{tpu_custom_call.1} parent=1 // pred_fallthru
      _
    // Predicated region
    $region30: #{tpu_custom_call.1} parent=1 // pred_check
      _
    $region31: #{tpu_custom_call.1} parent=1 // pred_check_branch
      %29 = sbr.rel (0) target = $region33
    $region32: #{tpu_custom_call.1} parent=1 // pred_region
      _
    $region33: #{tpu_custom_call.1} parent=1 // pred_fallthru
      _
    %p31 = scmp.eq.s32.totalorder 0, 0
    // Predicated region
    $region34: #{tpu_custom_call.1} parent=1 // pred_check
      %p32 = pneg %p31
    $region35: #{tpu_custom_call.1} parent=1 // pred_check_branch
      %34 = sbr.rel (%p32) target = $region37
    $region36: #{tpu_custom_call.1} parent=1 // pred_region
      %v35 = vld [vmem:[%s0] sm:$0xff]
      %v36 = vld [vmem:[%s0 + $0x8] sm:$0xff]
      %vm37 = vcmask 261120
      %38 = vst.msk [vmem:[#allocation2] sm:$0xff] %vm37, %v35
      %39 = vst.msk [vmem:[#allocation2 + $0x8] sm:$0xff] %vm37, %v36
    $region37: #{tpu_custom_call.1} parent=1 // pred_fallthru
      _
    %v40 = vld [vmem:[%s1] sm:$0xff]
    %v41 = vld [vmem:[%s1 + $0x8] sm:$0xff]
    %v42 = vld [vmem:[%s2] sm:$0x1]
    %v43 = vld [vmem:[%s2 + $0x1] sm:$0x1]
    %45 = vset.pattern.permute.xlu0 0
    %46 = vperm.xlu0 %45, %v40
    %v47 = vpop.permute.xlu0 %46
    %50 = vset.pattern.permute.xlu0 0
    %51 = vperm.xlu0 %50, %v41
    %v52 = vpop.permute.xlu0 %51
    %v56 = vperm.slane %v42, 0
    %v57 = vperm.slane %v43, 0
    %v60 = vmul.f32 %v47, %v56
    %v61 = vmul.f32 %v52, %v57
    %vm62 = vcmp.gt.f32.partialorder %v60, 0.0
    %vm63 = vcmp.gt.f32.partialorder %v61, 0.0
    %v64 = vld [vmem:[#allocation2] sm:$0xff]
    %v65 = vld [vmem:[#allocation2 + $0x8] sm:$0xff]
    %v66 = vld [vmem:[%s3] sm:$0xff]
    %v67 = vld [vmem:[%s3 + $0x8] sm:$0xff]
    %v68 = vld [vmem:[%s3 + $0x10] sm:$0xff]
    %v69 = vld [vmem:[%s3 + $0x18] sm:$0xff]
    %v70 = vld [vmem:[%s4] sm:$0xf]
    %v71 = vld [vmem:[%s4 + $0x4] sm:$0xf]
    %v72 = vld [vmem:[%s4 + $0x8] sm:$0xf]
    %v73 = vld [vmem:[%s4 + $0xc] sm:$0xf]
    %v74 = vld [vmem:[%s4 + $0x10] sm:$0xf]
    %v75 = vld [vmem:[%s4 + $0x14] sm:$0xf]
    %v76 = vld [vmem:[%s4 + $0x18] sm:$0xf]
    %v77 = vld [vmem:[%s4 + $0x1c] sm:$0xf]
    %v78 = vld [vmem:[%s4 + $0x20] sm:$0xf]
    %v79 = vld [vmem:[%s4 + $0x24] sm:$0xf]
    %v80 = vld [vmem:[%s4 + $0x28] sm:$0xf]
    %v81 = vld [vmem:[%s4 + $0x2c] sm:$0xf]
    %v82 = vld [vmem:[%s5] sm:$0x3f]
    %v83 = vld [vmem:[%s6] sm:$0x1]
    %vm84 = vcmask 261120
    %v85 = vsel %vm84, %v64, 0.0
    %86 = vadd.xlane.f32.xlu0 %v85
    %v87 = vpop.xlane.xlu0 %86
    %v88 = vsel %vm84, %v65, 0.0
    %89 = vadd.xlane.f32.xlu0 %v88
    %v90 = vpop.xlane.xlu0 %89
    %v91 = vrcp.pop 32.0
    %v92 = vmul.f32 32.0, %v91
    %v93 = vsub.f32 1.0, %v92
    %v94 = vmul.f32 %v91, %v93
    %v95 = vadd.f32 %v91, %v94
    %vm96 = vweird.f32 %v91
    %v97 = vsel %vm96, %v91, %v95
    %v98 = vmul.f32 %v87, %v97
    %v99 = vmul.f32 %v90, %v97
    %v100 = vsub.f32 %v64, %v98
    %v101 = vsub.f32 %v65, %v99
    %v102 = vmul.f32 %v100, %v100
    %v103 = vmul.f32 %v101, %v101
    %v104 = vsel %vm84, %v102, 0.0
    %105 = vadd.xlane.f32.xlu0 %v104
    %v106 = vpop.xlane.xlu0 %105
    %v107 = vsel %vm84, %v103, 0.0
    %108 = vadd.xlane.f32.xlu0 %v107
    %v109 = vpop.xlane.xlu0 %108
    %v110 = vmul.f32 %v106, %v97
    %v111 = vmul.f32 %v109, %v97
    %v112 = vadd.f32 %v110, 1e-05
    %v113 = vadd.f32 %v111, 1e-05
    %v114 = vrsqrt.pop %v112
    %v115 = vmul.f32 %v114, %v112
    %v116 = vmul.f32 %v115, %v114
    %v117 = vmul.f32 0.5, %v116
    %v118 = vsub.f32 1.5, %v117
    %v119 = vmul.f32 %v114, %v118
    %vm120 = vweird.f32 %v112
    %vm121 = vweird.f32 %v114
    %vm122 = vmor %vm120, %vm121
    %v123 = vsel %vm122, %v114, %v119
    %v124 = vrsqrt.pop %v113
    %v125 = vmul.f32 %v124, %v113
    %v126 = vmul.f32 %v125, %v124
    %v127 = vmul.f32 0.5, %v126
    %v128 = vsub.f32 1.5, %v127
    %v129 = vmul.f32 %v124, %v128
    %vm130 = vweird.f32 %v113
    %vm131 = vweird.f32 %v124
    %vm132 = vmor %vm130, %vm131
    %v133 = vsel %vm132, %v124, %v129
    %v134 = vmul.f32 %v100, %v123
    %v135 = vmul.f32 %v101, %v133
    %v136 = vperm.slane %v82, 0
    %v137 = vmul.f32 %v134, %v136
    %v138 = vmul.f32 %v135, %v136
    %v139 = vperm.slane %v82, 1
    %v140 = vadd.f32 %v137, %v139
    %v141 = vadd.f32 %v138, %v139
    %v142 = vpack.c.bf16 %v141, %v140
    %v147 = vunpack.c.l.b16 %v66
    %v148 = vunpack.c.l.b16 %v67
    %v149 = vunpack.c.l.b16 %v68
    %v150 = vunpack.c.l.b16 %v69
    %v151 = vpack.c.b16 %v148, %v147
    %v152 = vpack.c.b16 %v150, %v149
    %v156 = vsel %vm84, %v142, 0
    %158 = vmatpush.bf16.msra.mxu0 0
    %159 = vmatpush.bf16.msra.mxu0 0
    %160 = vmatpush.bf16.msra.mxu0 0
    %161 = vmatpush.bf16.msra.mxu0 0
    %162 = vmatpush.bf16.msra.mxu0 0
    %163 = vmatpush.bf16.msra.mxu0 0
    %164 = vmatpush.bf16.msra.mxu0 %v152
    %165 = vmatpush.bf16.msra.mxu0 %v151
    %166 = vmatmul.bf16.gmra.mxu0 %v156
    %v167 = vpop.f32.mrf.mxu0
    %v168 = vadd.f32 0.0, %v167
    %v169 = vpop.f32.mrf.mxu0
    %v170 = vadd.f32 0.0, %v169
    %171 = vdwg.mxu0
    %v172 = vmul.f32 %v168, 0.35355338
    %v173 = vmul.f32 %v170, 0.35355338
    %v174 = vpack.c.bf16 %v172, %v172
    %v175 = vpack.c.bf16 %v173, %v173
    %v176 = vpack.c.bf16 %v168, %v168
    %v177 = vpack.c.bf16 %v170, %v170
    %v179 = vunpack.c.l.b16 %v176
    %v180 = vpack.c.b16 %v179, %v179
    %181 = vrot.lane.b32.xlu0 %v180, 96
    %v182 = vpop.permute.xlu0 %181
    %vm183 = vcmask 64512
    %v185 = vsel %vm183, %v174, 0
    %v188 = vsel %vm183, %v182, 0
    %190 = vmatpush.bf16.xpose.msra.mxu0 0
    %191 = vmatpush.bf16.xpose.msra.mxu0 0
    %192 = vmatpush.bf16.xpose.msra.mxu0 0
    %193 = vmatpush.bf16.xpose.msra.mxu0 0
    %194 = vmatpush.bf16.xpose.msra.mxu0 0
    %195 = vmatpush.bf16.xpose.msra.mxu0 0
    %196 = vmatpush.bf16.xpose.msra.mxu0 0
    %197 = vmatpush.bf16.xpose.msra.mxu0 %v188
    %198 = vmatmul.bf16.gmra.mxu0 %v185
    %v199 = vpop.f32.mrf.mxu0
    %v200 = vadd.f32 0.0, %v199
    %v201 = vpop.f32.mrf.mxu0
    %202 = vdwg.mxu0
    %v204 = vunpack.c.l.b16 %v177
    %v205 = vpack.c.b16 %v204, %v204
    %206 = vrot.lane.b32.xlu0 %v205, 96
    %v207 = vpop.permute.xlu0 %206
    %v209 = vsel %vm183, %v175, 0
    %v212 = vsel %vm183, %v207, 0
    %214 = vmatpush.bf16.xpose.msra.mxu0 0
    %215 = vmatpush.bf16.xpose.msra.mxu0 0
    %216 = vmatpush.bf16.xpose.msra.mxu0 0
    %217 = vmatpush.bf16.xpose.msra.mxu0 0
    %218 = vmatpush.bf16.xpose.msra.mxu0 0
    %219 = vmatpush.bf16.xpose.msra.mxu0 0
    %220 = vmatpush.bf16.xpose.msra.mxu0 0
    %221 = vmatpush.bf16.xpose.msra.mxu0 %v212
    %222 = vmatmul.bf16.gmra.mxu0 %v209
    %v223 = vpop.f32.mrf.mxu0
    %v224 = vadd.f32 0.0, %v223
    %v225 = vpop.f32.mrf.mxu0
    %226 = vdwg.mxu0
    %v227 = vsel %vm62, %v200, -3.4028235e+38
    %v228 = vsel %vm63, %v224, -3.4028235e+38
    %v229 = vsel %vm183, %v227, -inf
    %230 = vmax.xlane.f32.xlu0 %v229
    %v231 = vpop.xlane.xlu0 %230
    %v232 = vsel %vm183, %v228, -inf
    %233 = vmax.xlane.f32.xlu0 %v232
    %v234 = vpop.xlane.xlu0 %233
    %v235 = vsub.f32 %v227, %v231
    %v236 = vsub.f32 %v228, %v234
    %v237 = vmul.f32 %v235, 1.442695
    %v238 = vpow.pop %v237
    %v239 = vmul.f32 %v236, 1.442695
    %v240 = vpow.pop %v239
    %v241 = vsel %vm183, %v238, 0.0
    %242 = vadd.xlane.f32.xlu0 %v241
    %v243 = vpop.xlane.xlu0 %242
    %v244 = vsel %vm183, %v240, 0.0
    %245 = vadd.xlane.f32.xlu0 %v244
    %v246 = vpop.xlane.xlu0 %245
    %v247 = vrcp.pop %v243
    %v248 = vrcp.pop %v246
    %v249 = vmul.f32 %v238, %v247
    %v250 = vmul.f32 %v240, %v248
    %v251 = vpack.c.bf16 %v249, %v249
    %v252 = vpack.c.bf16 %v250, %v250
    %253 = vrot.lane.b32.xlu0 %v180, 64
    %v254 = vpop.permute.xlu0 %253
    %v256 = vsel %vm183, %v251, 0
    %vm258 = vcmask 1043456
    %v260 = vsel %vm258, %v254, 0
    %262 = vmatpush.bf16.msra.mxu0 0
    %263 = vmatpush.bf16.msra.mxu0 0
    %264 = vmatpush.bf16.msra.mxu0 0
    %265 = vmatpush.bf16.msra.mxu0 0
    %266 = vmatpush.bf16.msra.mxu0 0
    %267 = vmatpush.bf16.msra.mxu0 0
    %268 = vmatpush.bf16.msra.mxu0 0
    %269 = vmatpush.bf16.msra.mxu0 %v260
    %270 = vmatmul.bf16.gmra.mxu0 %v256
    %v271 = vpop.f32.mrf.mxu0
    %v272 = vadd.f32 0.0, %v271
    %v273 = vpop.f32.mrf.mxu0
    %274 = vdwg.mxu0
    %275 = vrot.lane.b32.xlu0 %v205, 64
    %v276 = vpop.permute.xlu0 %275
    %v278 = vsel %vm183, %v252, 0
    %v281 = vsel %vm258, %v276, 0
    %283 = vmatpush.bf16.msra.mxu0 0
    %284 = vmatpush.bf16.msra.mxu0 0
    %285 = vmatpush.bf16.msra.mxu0 0
    %286 = vmatpush.bf16.msra.mxu0 0
    %287 = vmatpush.bf16.msra.mxu0 0
    %288 = vmatpush.bf16.msra.mxu0 0
    %289 = vmatpush.bf16.msra.mxu0 0
    %290 = vmatpush.bf16.msra.mxu0 %v281
    %291 = vmatmul.bf16.gmra.mxu0 %v278
    %v292 = vpop.f32.mrf.mxu0
    %v293 = vadd.f32 0.0, %v292
    %v294 = vpop.f32.mrf.mxu0
    %295 = vdwg.mxu0
    %v297 = vunpack.c.l.b16 %v174
    %v298 = vpack.c.b16 %v297, %v297
    %299 = vrot.lane.b32.xlu0 %v298, 120
    %v300 = vpop.permute.xlu0 %299
    %301 = vrot.lane.b32.xlu0 %v180, 88
    %v302 = vpop.permute.xlu0 %301
    %v304 = vsel %vm183, %v300, 0
    %v307 = vsel %vm183, %v302, 0
    %309 = vmatpush.bf16.xpose.msra.mxu0 0
    %310 = vmatpush.bf16.xpose.msra.mxu0 0
    %311 = vmatpush.bf16.xpose.msra.mxu0 0
    %312 = vmatpush.bf16.xpose.msra.mxu0 0
    %313 = vmatpush.bf16.xpose.msra.mxu0 0
    %314 = vmatpush.bf16.xpose.msra.mxu0 0
    %315 = vmatpush.bf16.xpose.msra.mxu0 0
    %316 = vmatpush.bf16.xpose.msra.mxu0 %v307
    %317 = vmatmul.bf16.gmra.mxu0 %v304
    %v318 = vpop.f32.mrf.mxu0
    %v319 = vadd.f32 0.0, %v318
    %v320 = vpop.f32.mrf.mxu0
    %321 = vdwg.mxu0
    %v323 = vunpack.c.l.b16 %v175
    %v324 = vpack.c.b16 %v323, %v323
    %325 = vrot.lane.b32.xlu0 %v324, 120
    %v326 = vpop.permute.xlu0 %325
    %327 = vrot.lane.b32.xlu0 %v205, 88
    %v328 = vpop.permute.xlu0 %327
    %v330 = vsel %vm183, %v326, 0
    %v333 = vsel %vm183, %v328, 0
    %335 = vmatpush.bf16.xpose.msra.mxu0 0
    %336 = vmatpush.bf16.xpose.msra.mxu0 0
    %337 = vmatpush.bf16.xpose.msra.mxu0 0
    %338 = vmatpush.bf16.xpose.msra.mxu0 0
    %339 = vmatpush.bf16.xpose.msra.mxu0 0
    %340 = vmatpush.bf16.xpose.msra.mxu0 0
    %341 = vmatpush.bf16.xpose.msra.mxu0 0
    %342 = vmatpush.bf16.xpose.msra.mxu0 %v333
    %343 = vmatmul.bf16.gmra.mxu0 %v330
    %v344 = vpop.f32.mrf.mxu0
    %v345 = vadd.f32 0.0, %v344
    %v346 = vpop.f32.mrf.mxu0
    %347 = vdwg.mxu0
    %v348 = vsel %vm62, %v319, -3.4028235e+38
    %v349 = vsel %vm63, %v345, -3.4028235e+38
    %v350 = vsel %vm183, %v348, -inf
    %351 = vmax.xlane.f32.xlu0 %v350
    %v352 = vpop.xlane.xlu0 %351
    %v353 = vsel %vm183, %v349, -inf
    %354 = vmax.xlane.f32.xlu0 %v353
    %v355 = vpop.xlane.xlu0 %354
    %v356 = vsub.f32 %v348, %v352
    %v357 = vsub.f32 %v349, %v355
    %v358 = vmul.f32 %v356, 1.442695
    %v359 = vpow.pop %v358
    %v360 = vmul.f32 %v357, 1.442695
    %v361 = vpow.pop %v360
    %v362 = vsel %vm183, %v359, 0.0
    %363 = vadd.xlane.f32.xlu0 %v362
    %v364 = vpop.xlane.xlu0 %363
    %v365 = vsel %vm183, %v361, 0.0
    %366 = vadd.xlane.f32.xlu0 %v365
    %v367 = vpop.xlane.xlu0 %366
    %v368 = vrcp.pop %v364
    %v369 = vrcp.pop %v367
    %v370 = vmul.f32 %v359, %v368
    %v371 = vmul.f32 %v361, %v369
    %v372 = vpack.c.bf16 %v370, %v370
    %v373 = vpack.c.bf16 %v371, %v371
    %374 = vrot.lane.b32.xlu0 %v180, 56
    %v375 = vpop.permute.xlu0 %374
    %v377 = vsel %vm183, %v372, 0
    %v380 = vsel %vm258, %v375, 0
    %382 = vmatpush.bf16.msra.mxu0 0
    %383 = vmatpush.bf16.msra.mxu0 0
    %384 = vmatpush.bf16.msra.mxu0 0
    %385 = vmatpush.bf16.msra.mxu0 0
    %386 = vmatpush.bf16.msra.mxu0 0
    %387 = vmatpush.bf16.msra.mxu0 0
    %388 = vmatpush.bf16.msra.mxu0 0
    %389 = vmatpush.bf16.msra.mxu0 %v380
    %390 = vmatmul.bf16.gmra.mxu0 %v377
    %v391 = vpop.f32.mrf.mxu0
    %v392 = vadd.f32 0.0, %v391
    %v393 = vpop.f32.mrf.mxu0
    %394 = vdwg.mxu0
    %395 = vrot.lane.b32.xlu0 %v205, 56
    %v396 = vpop.permute.xlu0 %395
    %v398 = vsel %vm183, %v373, 0
    %v401 = vsel %vm258, %v396, 0
    %403 = vmatpush.bf16.msra.mxu0 0
    %404 = vmatpush.bf16.msra.mxu0 0
    %405 = vmatpush.bf16.msra.mxu0 0
    %406 = vmatpush.bf16.msra.mxu0 0
    %407 = vmatpush.bf16.msra.mxu0 0
    %408 = vmatpush.bf16.msra.mxu0 0
    %409 = vmatpush.bf16.msra.mxu0 0
    %410 = vmatpush.bf16.msra.mxu0 %v401
    %411 = vmatmul.bf16.gmra.mxu0 %v398
    %v412 = vpop.f32.mrf.mxu0
    %v413 = vadd.f32 0.0, %v412
    %v414 = vpop.f32.mrf.mxu0
    %415 = vdwg.mxu0
    %416 = vrot.lane.b32.xlu0 %v298, 112
    %v417 = vpop.permute.xlu0 %416
    %418 = vrot.lane.b32.xlu0 %v180, 80
    %v419 = vpop.permute.xlu0 %418
    %v421 = vsel %vm183, %v417, 0
    %v424 = vsel %vm183, %v419, 0
    %426 = vmatpush.bf16.xpose.msra.mxu0 0
    %427 = vmatpush.bf16.xpose.msra.mxu0 0
    %428 = vmatpush.bf16.xpose.msra.mxu0 0
    %429 = vmatpush.bf16.xpose.msra.mxu0 0
    %430 = vmatpush.bf16.xpose.msra.mxu0 0
    %431 = vmatpush.bf16.xpose.msra.mxu0 0
    %432 = vmatpush.bf16.xpose.msra.mxu0 0
    %433 = vmatpush.bf16.xpose.msra.mxu0 %v424
    %434 = vmatmul.bf16.gmra.mxu0 %v421
    %v435 = vpop.f32.mrf.mxu0
    %v436 = vadd.f32 0.0, %v435
    %v437 = vpop.f32.mrf.mxu0
    %438 = vdwg.mxu0
    %439 = vrot.lane.b32.xlu0 %v324, 112
    %v440 = vpop.permute.xlu0 %439
    %441 = vrot.lane.b32.xlu0 %v205, 80
    %v442 = vpop.permute.xlu0 %441
    %v444 = vsel %vm183, %v440, 0
    %v447 = vsel %vm183, %v442, 0
    %449 = vmatpush.bf16.xpose.msra.mxu0 0
    %450 = vmatpush.bf16.xpose.msra.mxu0 0
    %451 = vmatpush.bf16.xpose.msra.mxu0 0
    %452 = vmatpush.bf16.xpose.msra.mxu0 0
    %453 = vmatpush.bf16.xpose.msra.mxu0 0
    %454 = vmatpush.bf16.xpose.msra.mxu0 0
    %455 = vmatpush.bf16.xpose.msra.mxu0 0
    %456 = vmatpush.bf16.xpose.msra.mxu0 %v447
    %457 = vmatmul.bf16.gmra.mxu0 %v444
    %v458 = vpop.f32.mrf.mxu0
    %v459 = vadd.f32 0.0, %v458
    %v460 = vpop.f32.mrf.mxu0
    %461 = vdwg.mxu0
    %v462 = vsel %vm62, %v436, -3.4028235e+38
    %v463 = vsel %vm63, %v459, -3.4028235e+38
    %v464 = vsel %vm183, %v462, -inf
    %465 = vmax.xlane.f32.xlu0 %v464
    %v466 = vpop.xlane.xlu0 %465
    %v467 = vsel %vm183, %v463, -inf
    %468 = vmax.xlane.f32.xlu0 %v467
    %v469 = vpop.xlane.xlu0 %468
    %v470 = vsub.f32 %v462, %v466
    %v471 = vsub.f32 %v463, %v469
    %v472 = vmul.f32 %v470, 1.442695
    %v473 = vpow.pop %v472
    %v474 = vmul.f32 %v471, 1.442695
    %v475 = vpow.pop %v474
    %v476 = vsel %vm183, %v473, 0.0
    %477 = vadd.xlane.f32.xlu0 %v476
    %v478 = vpop.xlane.xlu0 %477
    %v479 = vsel %vm183, %v475, 0.0
    %480 = vadd.xlane.f32.xlu0 %v479
    %v481 = vpop.xlane.xlu0 %480
    %v482 = vrcp.pop %v478
    %v483 = vrcp.pop %v481
    %v484 = vmul.f32 %v473, %v482
    %v485 = vmul.f32 %v475, %v483
    %v486 = vpack.c.bf16 %v484, %v484
    %v487 = vpack.c.bf16 %v485, %v485
    %488 = vrot.lane.b32.xlu0 %v180, 48
    %v489 = vpop.permute.xlu0 %488
    %v491 = vsel %vm183, %v486, 0
    %v494 = vsel %vm258, %v489, 0
    %496 = vmatpush.bf16.msra.mxu0 0
    %497 = vmatpush.bf16.msra.mxu0 0
    %498 = vmatpush.bf16.msra.mxu0 0
    %499 = vmatpush.bf16.msra.mxu0 0
    %500 = vmatpush.bf16.msra.mxu0 0
    %501 = vmatpush.bf16.msra.mxu0 0
    %502 = vmatpush.bf16.msra.mxu0 0
    %503 = vmatpush.bf16.msra.mxu0 %v494
    %504 = vmatmul.bf16.gmra.mxu0 %v491
    %v505 = vpop.f32.mrf.mxu0
    %v506 = vadd.f32 0.0, %v505
    %v507 = vpop.f32.mrf.mxu0
    %508 = vdwg.mxu0
    %509 = vrot.lane.b32.xlu0 %v205, 48
    %v510 = vpop.permute.xlu0 %509
    %v512 = vsel %vm183, %v487, 0
    %v515 = vsel %vm258, %v510, 0
    %517 = vmatpush.bf16.msra.mxu0 0
    %518 = vmatpush.bf16.msra.mxu0 0
    %519 = vmatpush.bf16.msra.mxu0 0
    %520 = vmatpush.bf16.msra.mxu0 0
    %521 = vmatpush.bf16.msra.mxu0 0
    %522 = vmatpush.bf16.msra.mxu0 0
    %523 = vmatpush.bf16.msra.mxu0 0
    %524 = vmatpush.bf16.msra.mxu0 %v515
    %525 = vmatmul.bf16.gmra.mxu0 %v512
    %v526 = vpop.f32.mrf.mxu0
    %v527 = vadd.f32 0.0, %v526
    %v528 = vpop.f32.mrf.mxu0
    %529 = vdwg.mxu0
    %530 = vrot.lane.b32.xlu0 %v298, 104
    %v531 = vpop.permute.xlu0 %530
    %532 = vrot.lane.b32.xlu0 %v180, 72
    %v533 = vpop.permute.xlu0 %532
    %v535 = vsel %vm183, %v531, 0
    %v538 = vsel %vm183, %v533, 0
    %540 = vmatpush.bf16.xpose.msra.mxu0 0
    %541 = vmatpush.bf16.xpose.msra.mxu0 0
    %542 = vmatpush.bf16.xpose.msra.mxu0 0
    %543 = vmatpush.bf16.xpose.msra.mxu0 0
    %544 = vmatpush.bf16.xpose.msra.mxu0 0
    %545 = vmatpush.bf16.xpose.msra.mxu0 0
    %546 = vmatpush.bf16.xpose.msra.mxu0 0
    %547 = vmatpush.bf16.xpose.msra.mxu0 %v538
    %548 = vmatmul.bf16.gmra.mxu0 %v535
    %v549 = vpop.f32.mrf.mxu0
    %v550 = vadd.f32 0.0, %v549
    %v551 = vpop.f32.mrf.mxu0
    %552 = vdwg.mxu0
    %553 = vrot.lane.b32.xlu0 %v324, 104
    %v554 = vpop.permute.xlu0 %553
    %555 = vrot.lane.b32.xlu0 %v205, 72
    %v556 = vpop.permute.xlu0 %555
    %v558 = vsel %vm183, %v554, 0
    %v561 = vsel %vm183, %v556, 0
    %563 = vmatpush.bf16.xpose.msra.mxu0 0
    %564 = vmatpush.bf16.xpose.msra.mxu0 0
    %565 = vmatpush.bf16.xpose.msra.mxu0 0
    %566 = vmatpush.bf16.xpose.msra.mxu0 0
    %567 = vmatpush.bf16.xpose.msra.mxu0 0
    %568 = vmatpush.bf16.xpose.msra.mxu0 0
    %569 = vmatpush.bf16.xpose.msra.mxu0 0
    %570 = vmatpush.bf16.xpose.msra.mxu0 %v561
    %571 = vmatmul.bf16.gmra.mxu0 %v558
    %v572 = vpop.f32.mrf.mxu0
    %v573 = vadd.f32 0.0, %v572
    %v574 = vpop.f32.mrf.mxu0
    %575 = vdwg.mxu0
    %v576 = vsel %vm62, %v550, -3.4028235e+38
    %v577 = vsel %vm63, %v573, -3.4028235e+38
    %v578 = vsel %vm183, %v576, -inf
    %579 = vmax.xlane.f32.xlu0 %v578
    %v580 = vpop.xlane.xlu0 %579
    %v581 = vsel %vm183, %v577, -inf
    %582 = vmax.xlane.f32.xlu0 %v581
    %v583 = vpop.xlane.xlu0 %582
    %v584 = vsub.f32 %v576, %v580
    %v585 = vsub.f32 %v577, %v583
    %v586 = vmul.f32 %v584, 1.442695
    %v587 = vpow.pop %v586
    %v588 = vmul.f32 %v585, 1.442695
    %v589 = vpow.pop %v588
    %v590 = vsel %vm183, %v587, 0.0
    %591 = vadd.xlane.f32.xlu0 %v590
    %v592 = vpop.xlane.xlu0 %591
    %v593 = vsel %vm183, %v589, 0.0
    %594 = vadd.xlane.f32.xlu0 %v593
    %v595 = vpop.xlane.xlu0 %594
    %v596 = vrcp.pop %v592
    %v597 = vrcp.pop %v595
    %v598 = vmul.f32 %v587, %v596
    %v599 = vmul.f32 %v589, %v597
    %v600 = vpack.c.bf16 %v598, %v598
    %v601 = vpack.c.bf16 %v599, %v599
    %602 = vrot.lane.b32.xlu0 %v180, 40
    %v603 = vpop.permute.xlu0 %602
    %v605 = vsel %vm183, %v600, 0
    %v608 = vsel %vm258, %v603, 0
    %610 = vmatpush.bf16.msra.mxu0 0
    %611 = vmatpush.bf16.msra.mxu0 0
    %612 = vmatpush.bf16.msra.mxu0 0
    %613 = vmatpush.bf16.msra.mxu0 0
    %614 = vmatpush.bf16.msra.mxu0 0
    %615 = vmatpush.bf16.msra.mxu0 0
    %616 = vmatpush.bf16.msra.mxu0 0
    %617 = vmatpush.bf16.msra.mxu0 %v608
    %618 = vmatmul.bf16.gmra.mxu0 %v605
    %v619 = vpop.f32.mrf.mxu0
    %v620 = vadd.f32 0.0, %v619
    %v621 = vpop.f32.mrf.mxu0
    %622 = vdwg.mxu0
    %623 = vrot.lane.b32.xlu0 %v205, 40
    %v624 = vpop.permute.xlu0 %623
    %v626 = vsel %vm183, %v601, 0
    %v629 = vsel %vm258, %v624, 0
    %631 = vmatpush.bf16.msra.mxu0 0
    %632 = vmatpush.bf16.msra.mxu0 0
    %633 = vmatpush.bf16.msra.mxu0 0
    %634 = vmatpush.bf16.msra.mxu0 0
    %635 = vmatpush.bf16.msra.mxu0 0
    %636 = vmatpush.bf16.msra.mxu0 0
    %637 = vmatpush.bf16.msra.mxu0 0
    %638 = vmatpush.bf16.msra.mxu0 %v629
    %639 = vmatmul.bf16.gmra.mxu0 %v626
    %v640 = vpop.f32.mrf.mxu0
    %v641 = vadd.f32 0.0, %v640
    %v642 = vpop.f32.mrf.mxu0
    %643 = vdwg.mxu0
    %646 = vrot.lane.b32.xlu0 %v392, 8
    %v647 = vpop.permute.xlu0 %646
    %648 = vrot.lane.b32.xlu0 %v413, 8
    %v649 = vpop.permute.xlu0 %648
    %654 = vrot.lane.b32.xlu0 %v506, 16
    %v655 = vpop.permute.xlu0 %654
    %656 = vrot.lane.b32.xlu0 %v527, 16
    %v657 = vpop.permute.xlu0 %656
    %662 = vrot.lane.b32.xlu0 %v620, 24
    %v663 = vpop.permute.xlu0 %662
    %664 = vrot.lane.b32.xlu0 %v641, 24
    %v665 = vpop.permute.xlu0 %664
    %v668 = vsel %vm183, %v272, %v647
    %v669 = vsel %vm183, %v293, %v649
    %vm670 = vcmask 130048
    %v671 = vsel %vm670, %v668, %v655
    %v672 = vsel %vm670, %v669, %v657
    %vm673 = vcmask 195584
    %v674 = vsel %vm673, %v671, %v663
    %v675 = vsel %vm673, %v672, %v665
    %v676 = vpack.c.bf16 %v675, %v674
    %v681 = vunpack.c.l.b16 %v70
    %v682 = vunpack.c.l.b16 %v71
    %v683 = vunpack.c.l.b16 %v72
    %v684 = vunpack.c.l.b16 %v73
    %v685 = vpack.c.b16 %v682, %v681
    %v686 = vpack.c.b16 %v684, %v683
    %v690 = vsel %vm84, %v676, 0
    %692 = vmatpush.bf16.msra.mxu0 0
    %693 = vmatpush.bf16.msra.mxu0 0
    %694 = vmatpush.bf16.msra.mxu0 0
    %695 = vmatpush.bf16.msra.mxu0 0
    %696 = vmatpush.bf16.msra.mxu0 0
    %697 = vmatpush.bf16.msra.mxu0 0
    %698 = vmatpush.bf16.msra.mxu0 %v686
    %699 = vmatpush.bf16.msra.mxu0 %v685
    %700 = vmatmul.bf16.gmra.mxu0 %v690
    %v701 = vpop.f32.mrf.mxu0
    %v702 = vadd.f32 0.0, %v701
    %v703 = vpop.f32.mrf.mxu0
    %v704 = vadd.f32 0.0, %v703
    %705 = vdwg.mxu0
    %v706 = vadd.f32 %v64, %v702
    %v707 = vadd.f32 %v65, %v704
    %v708 = vperm.slane %v82, 4
    %v709 = vadd.f32 %v706, %v708
    %v710 = vadd.f32 %v707, %v708
    %v711 = vsel %vm84, %v709, 0.0
    %712 = vadd.xlane.f32.xlu0 %v711
    %v713 = vpop.xlane.xlu0 %712
    %v714 = vsel %vm84, %v710, 0.0
    %715 = vadd.xlane.f32.xlu0 %v714
    %v716 = vpop.xlane.xlu0 %715
    %v717 = vmul.f32 %v713, %v97
    %v718 = vmul.f32 %v716, %v97
    %v719 = vsub.f32 %v709, %v717
    %v720 = vsub.f32 %v710, %v718
    %v721 = vmul.f32 %v719, %v719
    %v722 = vmul.f32 %v720, %v720
    %v723 = vsel %vm84, %v721, 0.0
    %724 = vadd.xlane.f32.xlu0 %v723
    %v725 = vpop.xlane.xlu0 %724
    %v726 = vsel %vm84, %v722, 0.0
    %727 = vadd.xlane.f32.xlu0 %v726
    %v728 = vpop.xlane.xlu0 %727
    %v729 = vmul.f32 %v725, %v97
    %v730 = vmul.f32 %v728, %v97
    %v731 = vadd.f32 %v729, 1e-05
    %v732 = vadd.f32 %v730, 1e-05
    %v733 = vrsqrt.pop %v731
    %v734 = vmul.f32 %v733, %v731
    %v735 = vmul.f32 %v734, %v733
    %v736 = vmul.f32 0.5, %v735
    %v737 = vsub.f32 1.5, %v736
    %v738 = vmul.f32 %v733, %v737
    %vm739 = vweird.f32 %v731
    %vm740 = vweird.f32 %v733
    %vm741 = vmor %vm739, %vm740
    %v742 = vsel %vm741, %v733, %v738
    %v743 = vrsqrt.pop %v732
    %v744 = vmul.f32 %v743, %v732
    %v745 = vmul.f32 %v744, %v743
    %v746 = vmul.f32 0.5, %v745
    %v747 = vsub.f32 1.5, %v746
    %v748 = vmul.f32 %v743, %v747
    %vm749 = vweird.f32 %v732
    %vm750 = vweird.f32 %v743
    %vm751 = vmor %vm749, %vm750
    %v752 = vsel %vm751, %v743, %v748
    %v753 = vmul.f32 %v719, %v742
    %v754 = vmul.f32 %v720, %v752
    %v755 = vperm.slane %v82, 2
    %v756 = vmul.f32 %v753, %v755
    %v757 = vmul.f32 %v754, %v755
    %v758 = vperm.slane %v82, 3
    %v759 = vadd.f32 %v756, %v758
    %v760 = vadd.f32 %v757, %v758
    %v761 = vpack.c.bf16 %v760, %v759
    %v763 = vperm.slane %v83, 0
    %v765 = vunpack.c.h.b16 %v66
    %v766 = vunpack.c.h.b16 %v67
    %v767 = vunpack.c.h.b16 %v68
    %v768 = vunpack.c.h.b16 %v69
    %v769 = vpack.c.b16 %v766, %v765
    %v770 = vpack.c.b16 %v768, %v767
    %771 = vrot.lane.b32.xlu0 %v151, 32
    %v772 = vpop.permute.xlu0 %771
    %773 = vrot.lane.b32.xlu0 %v769, 32
    %v774 = vpop.permute.xlu0 %773
    %775 = vrot.lane.b32.xlu0 %v152, 32
    %v776 = vpop.permute.xlu0 %775
    %777 = vrot.lane.b32.xlu0 %v770, 32
    %v778 = vpop.permute.xlu0 %777
    %vm779 = vcmask 261120
    %v780 = vsel %vm779, %v772, %v774
    %v781 = vsel %vm779, %v776, %v778
    %v785 = vsel %vm84, %v761, 0
    %787 = vmatpush.bf16.msra.mxu0 0
    %788 = vmatpush.bf16.msra.mxu0 0
    %789 = vmatpush.bf16.msra.mxu0 0
    %790 = vmatpush.bf16.msra.mxu0 0
    %791 = vmatpush.bf16.msra.mxu0 0
    %792 = vmatpush.bf16.msra.mxu0 0
    %793 = vmatpush.bf16.msra.mxu0 %v781
    %794 = vmatpush.bf16.msra.mxu0 %v780
    %795 = vmatmul.bf16.gmra.mxu0 %v785
    %v796 = vpop.f32.mrf.mxu0
    %v797 = vadd.f32 %v763, %v796
    %v798 = vpop.f32.mrf.mxu0
    %v799 = vadd.f32 %v763, %v798
    %800 = vdwg.mxu0
    %v801 = vmul.f32 %v797, 0.5
    %v802 = vmul.f32 %v799, 0.5
    %v803 = vmul.f32 %v797, 0.044715
    %v804 = vmul.f32 %v799, 0.044715
    %v805 = vmul.f32 %v803, %v797
    %v806 = vmul.f32 %v804, %v799
    %v807 = vmul.f32 %v805, %v797
    %v808 = vmul.f32 %v806, %v799
    %v809 = vadd.f32 %v797, %v807
    %v810 = vadd.f32 %v799, %v808
    %v811 = vmul.f32 %v809, 0.7978846
    %v812 = vmul.f32 %v810, 0.7978846
    %v813 = vtanh.pop %v811
    %v814 = vtanh.pop %v812
    %v815 = vadd.f32 %v813, 1.0
    %v816 = vadd.f32 %v814, 1.0
    %v817 = vmul.f32 %v801, %v815
    %v818 = vmul.f32 %v802, %v816
    %v819 = vpack.c.bf16 %v818, %v817
    %v828 = vunpack.c.l.b16 %v74
    %v829 = vunpack.c.l.b16 %v75
    %v830 = vunpack.c.l.b16 %v76
    %v831 = vunpack.c.l.b16 %v77
    %v832 = vunpack.c.l.b16 %v78
    %v833 = vunpack.c.l.b16 %v79
    %v834 = vunpack.c.l.b16 %v80
    %v835 = vunpack.c.l.b16 %v81
    %v836 = vpack.c.b16 %v829, %v828
    %v837 = vpack.c.b16 %v831, %v830
    %v838 = vpack.c.b16 %v833, %v832
    %v839 = vpack.c.b16 %v835, %v834
    %vm844 = vcmask 523264
    %v846 = vsel %vm844, %v819, 0
    %848 = vmatpush.bf16.msra.mxu0 0
    %849 = vmatpush.bf16.msra.mxu0 0
    %850 = vmatpush.bf16.msra.mxu0 0
    %851 = vmatpush.bf16.msra.mxu0 0
    %852 = vmatpush.bf16.msra.mxu0 %v839
    %853 = vmatpush.bf16.msra.mxu0 %v838
    %854 = vmatpush.bf16.msra.mxu0 %v837
    %855 = vmatpush.bf16.msra.mxu0 %v836
    %856 = vmatmul.bf16.gmra.mxu0 %v846
    %v857 = vpop.f32.mrf.mxu0
    %v858 = vadd.f32 0.0, %v857
    %v859 = vpop.f32.mrf.mxu0
    %v860 = vadd.f32 0.0, %v859
    %861 = vdwg.mxu0
    %v862 = vadd.f32 %v759, %v858
    %v863 = vadd.f32 %v760, %v860
    %v864 = vperm.slane %v82, 5
    %v865 = vadd.f32 %v862, %v864
    %v866 = vadd.f32 %v863, %v864
    %s867 = scalar_lea.vmem %s3, 32
    %v868 = vld [vmem:[%s867] sm:$0xff]
    %v869 = vld [vmem:[%s867 + $0x8] sm:$0xff]
    %v870 = vld [vmem:[%s867 + $0x10] sm:$0xff]
    %v871 = vld [vmem:[%s867 + $0x18] sm:$0xff]
    %s872 = scalar_lea.vmem %s4, 48
    %v873 = vld [vmem:[%s872] sm:$0xf]
    %v874 = vld [vmem:[%s872 + $0x4] sm:$0xf]
    %v875 = vld [vmem:[%s872 + $0x8] sm:$0xf]
    %v876 = vld [vmem:[%s872 + $0xc] sm:$0xf]
    %v877 = vld [vmem:[%s872 + $0x10] sm:$0xf]
    %v878 = vld [vmem:[%s872 + $0x14] sm:$0xf]
    %v879 = vld [vmem:[%s872 + $0x18] sm:$0xf]
    %v880 = vld [vmem:[%s872 + $0x1c] sm:$0xf]
    %v881 = vld [vmem:[%s872 + $0x20] sm:$0xf]
    %v882 = vld [vmem:[%s872 + $0x24] sm:$0xf]
    %v883 = vld [vmem:[%s872 + $0x28] sm:$0xf]
    %v884 = vld [vmem:[%s872 + $0x2c] sm:$0xf]
    %s885 = scalar_lea.vmem %s5, 8
    %v886 = vld [vmem:[%s885] sm:$0x3f]
    %s887 = scalar_lea.vmem %s6, 1
    %v888 = vld [vmem:[%s887] sm:$0x1]
    %v889 = vsel %vm84, %v865, 0.0
    %890 = vadd.xlane.f32.xlu0 %v889
    %v891 = vpop.xlane.xlu0 %890
    %v892 = vsel %vm84, %v866, 0.0
    %893 = vadd.xlane.f32.xlu0 %v892
    %v894 = vpop.xlane.xlu0 %893
    %v895 = vmul.f32 %v891, %v97
    %v896 = vmul.f32 %v894, %v97
    %v897 = vsub.f32 %v865, %v895
    %v898 = vsub.f32 %v866, %v896
    %v899 = vmul.f32 %v897, %v897
    %v900 = vmul.f32 %v898, %v898
    %v901 = vsel %vm84, %v899, 0.0
    %902 = vadd.xlane.f32.xlu0 %v901
    %v903 = vpop.xlane.xlu0 %902
    %v904 = vsel %vm84, %v900, 0.0
    %905 = vadd.xlane.f32.xlu0 %v904
    %v906 = vpop.xlane.xlu0 %905
    %v907 = vmul.f32 %v903, %v97
    %v908 = vmul.f32 %v906, %v97
    %v909 = vadd.f32 %v907, 1e-05
    %v910 = vadd.f32 %v908, 1e-05
    %v911 = vrsqrt.pop %v909
    %v912 = vmul.f32 %v911, %v909
    %v913 = vmul.f32 %v912, %v911
    %v914 = vmul.f32 0.5, %v913
    %v915 = vsub.f32 1.5, %v914
    %v916 = vmul.f32 %v911, %v915
    %vm917 = vweird.f32 %v909
    %vm918 = vweird.f32 %v911
    %vm919 = vmor %vm917, %vm918
    %v920 = vsel %vm919, %v911, %v916
    %v921 = vrsqrt.pop %v910
    %v922 = vmul.f32 %v921, %v910
    %v923 = vmul.f32 %v922, %v921
    %v924 = vmul.f32 0.5, %v923
    %v925 = vsub.f32 1.5, %v924
    %v926 = vmul.f32 %v921, %v925
    %vm927 = vweird.f32 %v910
    %vm928 = vweird.f32 %v921
    %vm929 = vmor %vm927, %vm928
    %v930 = vsel %vm929, %v921, %v926
    %v931 = vmul.f32 %v897, %v920
    %v932 = vmul.f32 %v898, %v930
    %v933 = vperm.slane %v886, 0
    %v934 = vmul.f32 %v931, %v933
    %v935 = vmul.f32 %v932, %v933
    %v936 = vperm.slane %v886, 1
    %v937 = vadd.f32 %v934, %v936
    %v938 = vadd.f32 %v935, %v936
    %v939 = vpack.c.bf16 %v938, %v937
    %v944 = vunpack.c.l.b16 %v868
    %v945 = vunpack.c.l.b16 %v869
    %v946 = vunpack.c.l.b16 %v870
    %v947 = vunpack.c.l.b16 %v871
    %v948 = vpack.c.b16 %v945, %v944
    %v949 = vpack.c.b16 %v947, %v946
    %v953 = vsel %vm84, %v939, 0
    %955 = vmatpush.bf16.msra.mxu0 0
    %956 = vmatpush.bf16.msra.mxu0 0
    %957 = vmatpush.bf16.msra.mxu0 0
    %958 = vmatpush.bf16.msra.mxu0 0
    %959 = vmatpush.bf16.msra.mxu0 0
    %960 = vmatpush.bf16.msra.mxu0 0
    %961 = vmatpush.bf16.msra.mxu0 %v949
    %962 = vmatpush.bf16.msra.mxu0 %v948
    %963 = vmatmul.bf16.gmra.mxu0 %v953
    %v964 = vpop.f32.mrf.mxu0
    %v965 = vadd.f32 0.0, %v964
    %v966 = vpop.f32.mrf.mxu0
    %v967 = vadd.f32 0.0, %v966
    %968 = vdwg.mxu0
    %v969 = vmul.f32 %v965, 0.35355338
    %v970 = vmul.f32 %v967, 0.35355338
    %v971 = vpack.c.bf16 %v969, %v969
    %v972 = vpack.c.bf16 %v970, %v970
    %v973 = vpack.c.bf16 %v965, %v965
    %v974 = vpack.c.bf16 %v967, %v967
    %v976 = vunpack.c.l.b16 %v973
    %v977 = vpack.c.b16 %v976, %v976
    %978 = vrot.lane.b32.xlu0 %v977, 96
    %v979 = vpop.permute.xlu0 %978
    %v981 = vsel %vm183, %v971, 0
    %v984 = vsel %vm183, %v979, 0
    %986 = vmatpush.bf16.xpose.msra.mxu0 0
    %987 = vmatpush.bf16.xpose.msra.mxu0 0
    %988 = vmatpush.bf16.xpose.msra.mxu0 0
    %989 = vmatpush.bf16.xpose.msra.mxu0 0
    %990 = vmatpush.bf16.xpose.msra.mxu0 0
    %991 = vmatpush.bf16.xpose.msra.mxu0 0
    %992 = vmatpush.bf16.xpose.msra.mxu0 0
    %993 = vmatpush.bf16.xpose.msra.mxu0 %v984
    %994 = vmatmul.bf16.gmra.mxu0 %v981
    %v995 = vpop.f32.mrf.mxu0
    %v996 = vadd.f32 0.0, %v995
    %v997 = vpop.f32.mrf.mxu0
    %998 = vdwg.mxu0
    %v1000 = vunpack.c.l.b16 %v974
    %v1001 = vpack.c.b16 %v1000, %v1000
    %1002 = vrot.lane.b32.xlu0 %v1001, 96
    %v1003 = vpop.permute.xlu0 %1002
    %v1005 = vsel %vm183, %v972, 0
    %v1008 = vsel %vm183, %v1003, 0
    %1010 = vmatpush.bf16.xpose.msra.mxu0 0
    %1011 = vmatpush.bf16.xpose.msra.mxu0 0
    %1012 = vmatpush.bf16.xpose.msra.mxu0 0
    %1013 = vmatpush.bf16.xpose.msra.mxu0 0
    %1014 = vmatpush.bf16.xpose.msra.mxu0 0
    %1015 = vmatpush.bf16.xpose.msra.mxu0 0
    %1016 = vmatpush.bf16.xpose.msra.mxu0 0
    %1017 = vmatpush.bf16.xpose.msra.mxu0 %v1008
    %1018 = vmatmul.bf16.gmra.mxu0 %v1005
    %v1019 = vpop.f32.mrf.mxu0
    %v1020 = vadd.f32 0.0, %v1019
    %v1021 = vpop.f32.mrf.mxu0
    %1022 = vdwg.mxu0
    %v1023 = vsel %vm62, %v996, -3.4028235e+38
    %v1024 = vsel %vm63, %v1020, -3.4028235e+38
    %v1025 = vsel %vm183, %v1023, -inf
    %1026 = vmax.xlane.f32.xlu0 %v1025
    %v1027 = vpop.xlane.xlu0 %1026
    %v1028 = vsel %vm183, %v1024, -inf
    %1029 = vmax.xlane.f32.xlu0 %v1028
    %v1030 = vpop.xlane.xlu0 %1029
    %v1031 = vsub.f32 %v1023, %v1027
    %v1032 = vsub.f32 %v1024, %v1030
    %v1033 = vmul.f32 %v1031, 1.442695
    %v1034 = vpow.pop %v1033
    %v1035 = vmul.f32 %v1032, 1.442695
    %v1036 = vpow.pop %v1035
    %v1037 = vsel %vm183, %v1034, 0.0
    %1038 = vadd.xlane.f32.xlu0 %v1037
    %v1039 = vpop.xlane.xlu0 %1038
    %v1040 = vsel %vm183, %v1036, 0.0
    %1041 = vadd.xlane.f32.xlu0 %v1040
    %v1042 = vpop.xlane.xlu0 %1041
    %v1043 = vrcp.pop %v1039
    %v1044 = vrcp.pop %v1042
    %v1045 = vmul.f32 %v1034, %v1043
    %v1046 = vmul.f32 %v1036, %v1044
    %v1047 = vpack.c.bf16 %v1045, %v1045
    %v1048 = vpack.c.bf16 %v1046, %v1046
    %1049 = vrot.lane.b32.xlu0 %v977, 64
    %v1050 = vpop.permute.xlu0 %1049
    %v1052 = vsel %vm183, %v1047, 0
    %v1055 = vsel %vm258, %v1050, 0
    %1057 = vmatpush.bf16.msra.mxu0 0
    %1058 = vmatpush.bf16.msra.mxu0 0
    %1059 = vmatpush.bf16.msra.mxu0 0
    %1060 = vmatpush.bf16.msra.mxu0 0
    %1061 = vmatpush.bf16.msra.mxu0 0
    %1062 = vmatpush.bf16.msra.mxu0 0
    %1063 = vmatpush.bf16.msra.mxu0 0
    %1064 = vmatpush.bf16.msra.mxu0 %v1055
    %1065 = vmatmul.bf16.gmra.mxu0 %v1052
    %v1066 = vpop.f32.mrf.mxu0
    %v1067 = vadd.f32 0.0, %v1066
    %v1068 = vpop.f32.mrf.mxu0
    %1069 = vdwg.mxu0
    %1070 = vrot.lane.b32.xlu0 %v1001, 64
    %v1071 = vpop.permute.xlu0 %1070
    %v1073 = vsel %vm183, %v1048, 0
    %v1076 = vsel %vm258, %v1071, 0
    %1078 = vmatpush.bf16.msra.mxu0 0
    %1079 = vmatpush.bf16.msra.mxu0 0
    %1080 = vmatpush.bf16.msra.mxu0 0
    %1081 = vmatpush.bf16.msra.mxu0 0
    %1082 = vmatpush.bf16.msra.mxu0 0
    %1083 = vmatpush.bf16.msra.mxu0 0
    %1084 = vmatpush.bf16.msra.mxu0 0
    %1085 = vmatpush.bf16.msra.mxu0 %v1076
    %1086 = vmatmul.bf16.gmra.mxu0 %v1073
    %v1087 = vpop.f32.mrf.mxu0
    %v1088 = vadd.f32 0.0, %v1087
    %v1089 = vpop.f32.mrf.mxu0
    %1090 = vdwg.mxu0
    %v1092 = vunpack.c.l.b16 %v971
    %v1093 = vpack.c.b16 %v1092, %v1092
    %1094 = vrot.lane.b32.xlu0 %v1093, 120
    %v1095 = vpop.permute.xlu0 %1094
    %1096 = vrot.lane.b32.xlu0 %v977, 88
    %v1097 = vpop.permute.xlu0 %1096
    %v1099 = vsel %vm183, %v1095, 0
    %v1102 = vsel %vm183, %v1097, 0
    %1104 = vmatpush.bf16.xpose.msra.mxu0 0
    %1105 = vmatpush.bf16.xpose.msra.mxu0 0
    %1106 = vmatpush.bf16.xpose.msra.mxu0 0
    %1107 = vmatpush.bf16.xpose.msra.mxu0 0
    %1108 = vmatpush.bf16.xpose.msra.mxu0 0
    %1109 = vmatpush.bf16.xpose.msra.mxu0 0
    %1110 = vmatpush.bf16.xpose.msra.mxu0 0
    %1111 = vmatpush.bf16.xpose.msra.mxu0 %v1102
    %1112 = vmatmul.bf16.gmra.mxu0 %v1099
    %v1113 = vpop.f32.mrf.mxu0
    %v1114 = vadd.f32 0.0, %v1113
    %v1115 = vpop.f32.mrf.mxu0
    %1116 = vdwg.mxu0
    %v1118 = vunpack.c.l.b16 %v972
    %v1119 = vpack.c.b16 %v1118, %v1118
    %1120 = vrot.lane.b32.xlu0 %v1119, 120
    %v1121 = vpop.permute.xlu0 %1120
    %1122 = vrot.lane.b32.xlu0 %v1001, 88
    %v1123 = vpop.permute.xlu0 %1122
    %v1125 = vsel %vm183, %v1121, 0
    %v1128 = vsel %vm183, %v1123, 0
    %1130 = vmatpush.bf16.xpose.msra.mxu0 0
    %1131 = vmatpush.bf16.xpose.msra.mxu0 0
    %1132 = vmatpush.bf16.xpose.msra.mxu0 0
    %1133 = vmatpush.bf16.xpose.msra.mxu0 0
    %1134 = vmatpush.bf16.xpose.msra.mxu0 0
    %1135 = vmatpush.bf16.xpose.msra.mxu0 0
    %1136 = vmatpush.bf16.xpose.msra.mxu0 0
    %1137 = vmatpush.bf16.xpose.msra.mxu0 %v1128
    %1138 = vmatmul.bf16.gmra.mxu0 %v1125
    %v1139 = vpop.f32.mrf.mxu0
    %v1140 = vadd.f32 0.0, %v1139
    %v1141 = vpop.f32.mrf.mxu0
    %1142 = vdwg.mxu0
    %v1143 = vsel %vm62, %v1114, -3.4028235e+38
    %v1144 = vsel %vm63, %v1140, -3.4028235e+38
    %v1145 = vsel %vm183, %v1143, -inf
    %1146 = vmax.xlane.f32.xlu0 %v1145
    %v1147 = vpop.xlane.xlu0 %1146
    %v1148 = vsel %vm183, %v1144, -inf
    %1149 = vmax.xlane.f32.xlu0 %v1148
    %v1150 = vpop.xlane.xlu0 %1149
    %v1151 = vsub.f32 %v1143, %v1147
    %v1152 = vsub.f32 %v1144, %v1150
    %v1153 = vmul.f32 %v1151, 1.442695
    %v1154 = vpow.pop %v1153
    %v1155 = vmul.f32 %v1152, 1.442695
    %v1156 = vpow.pop %v1155
    %v1157 = vsel %vm183, %v1154, 0.0
    %1158 = vadd.xlane.f32.xlu0 %v1157
    %v1159 = vpop.xlane.xlu0 %1158
    %v1160 = vsel %vm183, %v1156, 0.0
    %1161 = vadd.xlane.f32.xlu0 %v1160
    %v1162 = vpop.xlane.xlu0 %1161
    %v1163 = vrcp.pop %v1159
    %v1164 = vrcp.pop %v1162
    %v1165 = vmul.f32 %v1154, %v1163
    %v1166 = vmul.f32 %v1156, %v1164
    %v1167 = vpack.c.bf16 %v1165, %v1165
    %v1168 = vpack.c.bf16 %v1166, %v1166
    %1169 = vrot.lane.b32.xlu0 %v977, 56
    %v1170 = vpop.permute.xlu0 %1169
    %v1172 = vsel %vm183, %v1167, 0
    %v1175 = vsel %vm258, %v1170, 0
    %1177 = vmatpush.bf16.msra.mxu0 0
    %1178 = vmatpush.bf16.msra.mxu0 0
    %1179 = vmatpush.bf16.msra.mxu0 0
    %1180 = vmatpush.bf16.msra.mxu0 0
    %1181 = vmatpush.bf16.msra.mxu0 0
    %1182 = vmatpush.bf16.msra.mxu0 0
    %1183 = vmatpush.bf16.msra.mxu0 0
    %1184 = vmatpush.bf16.msra.mxu0 %v1175
    %1185 = vmatmul.bf16.gmra.mxu0 %v1172
    %v1186 = vpop.f32.mrf.mxu0
    %v1187 = vadd.f32 0.0, %v1186
    %v1188 = vpop.f32.mrf.mxu0
    %1189 = vdwg.mxu0
    %1190 = vrot.lane.b32.xlu0 %v1001, 56
    %v1191 = vpop.permute.xlu0 %1190
    %v1193 = vsel %vm183, %v1168, 0
    %v1196 = vsel %vm258, %v1191, 0
    %1198 = vmatpush.bf16.msra.mxu0 0
    %1199 = vmatpush.bf16.msra.mxu0 0
    %1200 = vmatpush.bf16.msra.mxu0 0
    %1201 = vmatpush.bf16.msra.mxu0 0
    %1202 = vmatpush.bf16.msra.mxu0 0
    %1203 = vmatpush.bf16.msra.mxu0 0
    %1204 = vmatpush.bf16.msra.mxu0 0
    %1205 = vmatpush.bf16.msra.mxu0 %v1196
    %1206 = vmatmul.bf16.gmra.mxu0 %v1193
    %v1207 = vpop.f32.mrf.mxu0
    %v1208 = vadd.f32 0.0, %v1207
    %v1209 = vpop.f32.mrf.mxu0
    %1210 = vdwg.mxu0
    %1211 = vrot.lane.b32.xlu0 %v1093, 112
    %v1212 = vpop.permute.xlu0 %1211
    %1213 = vrot.lane.b32.xlu0 %v977, 80
    %v1214 = vpop.permute.xlu0 %1213
    %v1216 = vsel %vm183, %v1212, 0
    %v1219 = vsel %vm183, %v1214, 0
    %1221 = vmatpush.bf16.xpose.msra.mxu0 0
    %1222 = vmatpush.bf16.xpose.msra.mxu0 0
    %1223 = vmatpush.bf16.xpose.msra.mxu0 0
    %1224 = vmatpush.bf16.xpose.msra.mxu0 0
    %1225 = vmatpush.bf16.xpose.msra.mxu0 0
    %1226 = vmatpush.bf16.xpose.msra.mxu0 0
    %1227 = vmatpush.bf16.xpose.msra.mxu0 0
    %1228 = vmatpush.bf16.xpose.msra.mxu0 %v1219
    %1229 = vmatmul.bf16.gmra.mxu0 %v1216
    %v1230 = vpop.f32.mrf.mxu0
    %v1231 = vadd.f32 0.0, %v1230
    %v1232 = vpop.f32.mrf.mxu0
    %1233 = vdwg.mxu0
    %1234 = vrot.lane.b32.xlu0 %v1119, 112
    %v1235 = vpop.permute.xlu0 %1234
    %1236 = vrot.lane.b32.xlu0 %v1001, 80
    %v1237 = vpop.permute.xlu0 %1236
    %v1239 = vsel %vm183, %v1235, 0
    %v1242 = vsel %vm183, %v1237, 0
    %1244 = vmatpush.bf16.xpose.msra.mxu0 0
    %1245 = vmatpush.bf16.xpose.msra.mxu0 0
    %1246 = vmatpush.bf16.xpose.msra.mxu0 0
    %1247 = vmatpush.bf16.xpose.msra.mxu0 0
    %1248 = vmatpush.bf16.xpose.msra.mxu0 0
    %1249 = vmatpush.bf16.xpose.msra.mxu0 0
    %1250 = vmatpush.bf16.xpose.msra.mxu0 0
    %1251 = vmatpush.bf16.xpose.msra.mxu0 %v1242
    %1252 = vmatmul.bf16.gmra.mxu0 %v1239
    %v1253 = vpop.f32.mrf.mxu0
    %v1254 = vadd.f32 0.0, %v1253
    %v1255 = vpop.f32.mrf.mxu0
    %1256 = vdwg.mxu0
    %v1257 = vsel %vm62, %v1231, -3.4028235e+38
    %v1258 = vsel %vm63, %v1254, -3.4028235e+38
    %v1259 = vsel %vm183, %v1257, -inf
    %1260 = vmax.xlane.f32.xlu0 %v1259
    %v1261 = vpop.xlane.xlu0 %1260
    %v1262 = vsel %vm183, %v1258, -inf
    %1263 = vmax.xlane.f32.xlu0 %v1262
    %v1264 = vpop.xlane.xlu0 %1263
    %v1265 = vsub.f32 %v1257, %v1261
    %v1266 = vsub.f32 %v1258, %v1264
    %v1267 = vmul.f32 %v1265, 1.442695
    %v1268 = vpow.pop %v1267
    %v1269 = vmul.f32 %v1266, 1.442695
    %v1270 = vpow.pop %v1269
    %v1271 = vsel %vm183, %v1268, 0.0
    %1272 = vadd.xlane.f32.xlu0 %v1271
    %v1273 = vpop.xlane.xlu0 %1272
    %v1274 = vsel %vm183, %v1270, 0.0
    %1275 = vadd.xlane.f32.xlu0 %v1274
    %v1276 = vpop.xlane.xlu0 %1275
    %v1277 = vrcp.pop %v1273
    %v1278 = vrcp.pop %v1276
    %v1279 = vmul.f32 %v1268, %v1277
    %v1280 = vmul.f32 %v1270, %v1278
    %v1281 = vpack.c.bf16 %v1279, %v1279
    %v1282 = vpack.c.bf16 %v1280, %v1280
    %1283 = vrot.lane.b32.xlu0 %v977, 48
    %v1284 = vpop.permute.xlu0 %1283
    %v1286 = vsel %vm183, %v1281, 0
    %v1289 = vsel %vm258, %v1284, 0
    %1291 = vmatpush.bf16.msra.mxu0 0
    %1292 = vmatpush.bf16.msra.mxu0 0
    %1293 = vmatpush.bf16.msra.mxu0 0
    %1294 = vmatpush.bf16.msra.mxu0 0
    %1295 = vmatpush.bf16.msra.mxu0 0
    %1296 = vmatpush.bf16.msra.mxu0 0
    %1297 = vmatpush.bf16.msra.mxu0 0
    %1298 = vmatpush.bf16.msra.mxu0 %v1289
    %1299 = vmatmul.bf16.gmra.mxu0 %v1286
    %v1300 = vpop.f32.mrf.mxu0
    %v1301 = vadd.f32 0.0, %v1300
    %v1302 = vpop.f32.mrf.mxu0
    %1303 = vdwg.mxu0
    %1304 = vrot.lane.b32.xlu0 %v1001, 48
    %v1305 = vpop.permute.xlu0 %1304
    %v1307 = vsel %vm183, %v1282, 0
    %v1310 = vsel %vm258, %v1305, 0
    %1312 = vmatpush.bf16.msra.mxu0 0
    %1313 = vmatpush.bf16.msra.mxu0 0
    %1314 = vmatpush.bf16.msra.mxu0 0
    %1315 = vmatpush.bf16.msra.mxu0 0
    %1316 = vmatpush.bf16.msra.mxu0 0
    %1317 = vmatpush.bf16.msra.mxu0 0
    %1318 = vmatpush.bf16.msra.mxu0 0
    %1319 = vmatpush.bf16.msra.mxu0 %v1310
    %1320 = vmatmul.bf16.gmra.mxu0 %v1307
    %v1321 = vpop.f32.mrf.mxu0
    %v1322 = vadd.f32 0.0, %v1321
    %v1323 = vpop.f32.mrf.mxu0
    %1324 = vdwg.mxu0
    %1325 = vrot.lane.b32.xlu0 %v1093, 104
    %v1326 = vpop.permute.xlu0 %1325
    %1327 = vrot.lane.b32.xlu0 %v977, 72
    %v1328 = vpop.permute.xlu0 %1327
    %v1330 = vsel %vm183, %v1326, 0
    %v1333 = vsel %vm183, %v1328, 0
    %1335 = vmatpush.bf16.xpose.msra.mxu0 0
    %1336 = vmatpush.bf16.xpose.msra.mxu0 0
    %1337 = vmatpush.bf16.xpose.msra.mxu0 0
    %1338 = vmatpush.bf16.xpose.msra.mxu0 0
    %1339 = vmatpush.bf16.xpose.msra.mxu0 0
    %1340 = vmatpush.bf16.xpose.msra.mxu0 0
    %1341 = vmatpush.bf16.xpose.msra.mxu0 0
    %1342 = vmatpush.bf16.xpose.msra.mxu0 %v1333
    %1343 = vmatmul.bf16.gmra.mxu0 %v1330
    %v1344 = vpop.f32.mrf.mxu0
    %v1345 = vadd.f32 0.0, %v1344
    %v1346 = vpop.f32.mrf.mxu0
    %1347 = vdwg.mxu0
    %1348 = vrot.lane.b32.xlu0 %v1119, 104
    %v1349 = vpop.permute.xlu0 %1348
    %1350 = vrot.lane.b32.xlu0 %v1001, 72
    %v1351 = vpop.permute.xlu0 %1350
    %v1353 = vsel %vm183, %v1349, 0
    %v1356 = vsel %vm183, %v1351, 0
    %1358 = vmatpush.bf16.xpose.msra.mxu0 0
    %1359 = vmatpush.bf16.xpose.msra.mxu0 0
    %1360 = vmatpush.bf16.xpose.msra.mxu0 0
    %1361 = vmatpush.bf16.xpose.msra.mxu0 0
    %1362 = vmatpush.bf16.xpose.msra.mxu0 0
    %1363 = vmatpush.bf16.xpose.msra.mxu0 0
    %1364 = vmatpush.bf16.xpose.msra.mxu0 0
    %1365 = vmatpush.bf16.xpose.msra.mxu0 %v1356
    %1366 = vmatmul.bf16.gmra.mxu0 %v1353
    %v1367 = vpop.f32.mrf.mxu0
    %v1368 = vadd.f32 0.0, %v1367
    %v1369 = vpop.f32.mrf.mxu0
    %1370 = vdwg.mxu0
    %v1371 = vsel %vm62, %v1345, -3.4028235e+38
    %v1372 = vsel %vm63, %v1368, -3.4028235e+38
    %v1373 = vsel %vm183, %v1371, -inf
    %1374 = vmax.xlane.f32.xlu0 %v1373
    %v1375 = vpop.xlane.xlu0 %1374
    %v1376 = vsel %vm183, %v1372, -inf
    %1377 = vmax.xlane.f32.xlu0 %v1376
    %v1378 = vpop.xlane.xlu0 %1377
    %v1379 = vsub.f32 %v1371, %v1375
    %v1380 = vsub.f32 %v1372, %v1378
    %v1381 = vmul.f32 %v1379, 1.442695
    %v1382 = vpow.pop %v1381
    %v1383 = vmul.f32 %v1380, 1.442695
    %v1384 = vpow.pop %v1383
    %v1385 = vsel %vm183, %v1382, 0.0
    %1386 = vadd.xlane.f32.xlu0 %v1385
    %v1387 = vpop.xlane.xlu0 %1386
    %v1388 = vsel %vm183, %v1384, 0.0
    %1389 = vadd.xlane.f32.xlu0 %v1388
    %v1390 = vpop.xlane.xlu0 %1389
    %v1391 = vrcp.pop %v1387
    %v1392 = vrcp.pop %v1390
    %v1393 = vmul.f32 %v1382, %v1391
    %v1394 = vmul.f32 %v1384, %v1392
    %v1395 = vpack.c.bf16 %v1393, %v1393
    %v1396 = vpack.c.bf16 %v1394, %v1394
    %1397 = vrot.lane.b32.xlu0 %v977, 40
    %v1398 = vpop.permute.xlu0 %1397
    %v1400 = vsel %vm183, %v1395, 0
    %v1403 = vsel %vm258, %v1398, 0
    %1405 = vmatpush.bf16.msra.mxu0 0
    %1406 = vmatpush.bf16.msra.mxu0 0
    %1407 = vmatpush.bf16.msra.mxu0 0
    %1408 = vmatpush.bf16.msra.mxu0 0
    %1409 = vmatpush.bf16.msra.mxu0 0
    %1410 = vmatpush.bf16.msra.mxu0 0
    %1411 = vmatpush.bf16.msra.mxu0 0
    %1412 = vmatpush.bf16.msra.mxu0 %v1403
    %1413 = vmatmul.bf16.gmra.mxu0 %v1400
    %v1414 = vpop.f32.mrf.mxu0
    %v1415 = vadd.f32 0.0, %v1414
    %v1416 = vpop.f32.mrf.mxu0
    %1417 = vdwg.mxu0
    %1418 = vrot.lane.b32.xlu0 %v1001, 40
    %v1419 = vpop.permute.xlu0 %1418
    %v1421 = vsel %vm183, %v1396, 0
    %v1424 = vsel %vm258, %v1419, 0
    %1426 = vmatpush.bf16.msra.mxu0 0
    %1427 = vmatpush.bf16.msra.mxu0 0
    %1428 = vmatpush.bf16.msra.mxu0 0
    %1429 = vmatpush.bf16.msra.mxu0 0
    %1430 = vmatpush.bf16.msra.mxu0 0
    %1431 = vmatpush.bf16.msra.mxu0 0
    %1432 = vmatpush.bf16.msra.mxu0 0
    %1433 = vmatpush.bf16.msra.mxu0 %v1424
    %1434 = vmatmul.bf16.gmra.mxu0 %v1421
    %v1435 = vpop.f32.mrf.mxu0
    %v1436 = vadd.f32 0.0, %v1435
    %v1437 = vpop.f32.mrf.mxu0
    %1438 = vdwg.mxu0
    %1441 = vrot.lane.b32.xlu0 %v1187, 8
    %v1442 = vpop.permute.xlu0 %1441
    %1443 = vrot.lane.b32.xlu0 %v1208, 8
    %v1444 = vpop.permute.xlu0 %1443
    %1449 = vrot.lane.b32.xlu0 %v1301, 16
    %v1450 = vpop.permute.xlu0 %1449
    %1451 = vrot.lane.b32.xlu0 %v1322, 16
    %v1452 = vpop.permute.xlu0 %1451
    %1457 = vrot.lane.b32.xlu0 %v1415, 24
    %v1458 = vpop.permute.xlu0 %1457
    %1459 = vrot.lane.b32.xlu0 %v1436, 24
    %v1460 = vpop.permute.xlu0 %1459
    %v1463 = vsel %vm183, %v1067, %v1442
    %v1464 = vsel %vm183, %v1088, %v1444
    %v1465 = vsel %vm670, %v1463, %v1450
    %v1466 = vsel %vm670, %v1464, %v1452
    %v1467 = vsel %vm673, %v1465, %v1458
    %v1468 = vsel %vm673, %v1466, %v1460
    %v1469 = vpack.c.bf16 %v1468, %v1467
    %v1474 = vunpack.c.l.b16 %v873
    %v1475 = vunpack.c.l.b16 %v874
    %v1476 = vunpack.c.l.b16 %v875
    %v1477 = vunpack.c.l.b16 %v876
    %v1478 = vpack.c.b16 %v1475, %v1474
    %v1479 = vpack.c.b16 %v1477, %v1476
    %v1483 = vsel %vm84, %v1469, 0
    %1485 = vmatpush.bf16.msra.mxu0 0
    %1486 = vmatpush.bf16.msra.mxu0 0
    %1487 = vmatpush.bf16.msra.mxu0 0
    %1488 = vmatpush.bf16.msra.mxu0 0
    %1489 = vmatpush.bf16.msra.mxu0 0
    %1490 = vmatpush.bf16.msra.mxu0 0
    %1491 = vmatpush.bf16.msra.mxu0 %v1479
    %1492 = vmatpush.bf16.msra.mxu0 %v1478
    %1493 = vmatmul.bf16.gmra.mxu0 %v1483
    %v1494 = vpop.f32.mrf.mxu0
    %v1495 = vadd.f32 0.0, %v1494
    %v1496 = vpop.f32.mrf.mxu0
    %v1497 = vadd.f32 0.0, %v1496
    %1498 = vdwg.mxu0
    %v1499 = vadd.f32 %v865, %v1495
    %v1500 = vadd.f32 %v866, %v1497
    %v1501 = vperm.slane %v886, 4
    %v1502 = vadd.f32 %v1499, %v1501
    %v1503 = vadd.f32 %v1500, %v1501
    %v1504 = vsel %vm84, %v1502, 0.0
    %1505 = vadd.xlane.f32.xlu0 %v1504
    %v1506 = vpop.xlane.xlu0 %1505
    %v1507 = vsel %vm84, %v1503, 0.0
    %1508 = vadd.xlane.f32.xlu0 %v1507
    %v1509 = vpop.xlane.xlu0 %1508
    %v1510 = vmul.f32 %v1506, %v97
    %v1511 = vmul.f32 %v1509, %v97
    %v1512 = vsub.f32 %v1502, %v1510
    %v1513 = vsub.f32 %v1503, %v1511
    %v1514 = vmul.f32 %v1512, %v1512
    %v1515 = vmul.f32 %v1513, %v1513
    %v1516 = vsel %vm84, %v1514, 0.0
    %1517 = vadd.xlane.f32.xlu0 %v1516
    %v1518 = vpop.xlane.xlu0 %1517
    %v1519 = vsel %vm84, %v1515, 0.0
    %1520 = vadd.xlane.f32.xlu0 %v1519
    %v1521 = vpop.xlane.xlu0 %1520
    %v1522 = vmul.f32 %v1518, %v97
    %v1523 = vmul.f32 %v1521, %v97
    %v1524 = vadd.f32 %v1522, 1e-05
    %v1525 = vadd.f32 %v1523, 1e-05
    %v1526 = vrsqrt.pop %v1524
    %v1527 = vmul.f32 %v1526, %v1524
    %v1528 = vmul.f32 %v1527, %v1526
    %v1529 = vmul.f32 0.5, %v1528
    %v1530 = vsub.f32 1.5, %v1529
    %v1531 = vmul.f32 %v1526, %v1530
    %vm1532 = vweird.f32 %v1524
    %vm1533 = vweird.f32 %v1526
    %vm1534 = vmor %vm1532, %vm1533
    %v1535 = vsel %vm1534, %v1526, %v1531
    %v1536 = vrsqrt.pop %v1525
    %v1537 = vmul.f32 %v1536, %v1525
    %v1538 = vmul.f32 %v1537, %v1536
    %v1539 = vmul.f32 0.5, %v1538
    %v1540 = vsub.f32 1.5, %v1539
    %v1541 = vmul.f32 %v1536, %v1540
    %vm1542 = vweird.f32 %v1525
    %vm1543 = vweird.f32 %v1536
    %vm1544 = vmor %vm1542, %vm1543
    %v1545 = vsel %vm1544, %v1536, %v1541
    %v1546 = vmul.f32 %v1512, %v1535
    %v1547 = vmul.f32 %v1513, %v1545
    %v1548 = vperm.slane %v886, 2
    %v1549 = vmul.f32 %v1546, %v1548
    %v1550 = vmul.f32 %v1547, %v1548
    %v1551 = vperm.slane %v886, 3
    %v1552 = vadd.f32 %v1549, %v1551
    %v1553 = vadd.f32 %v1550, %v1551
    %v1554 = vpack.c.bf16 %v1553, %v1552
    %v1556 = vperm.slane %v888, 0
    %v1558 = vunpack.c.h.b16 %v868
    %v1559 = vunpack.c.h.b16 %v869
    %v1560 = vunpack.c.h.b16 %v870
    %v1561 = vunpack.c.h.b16 %v871
    %v1562 = vpack.c.b16 %v1559, %v1558
    %v1563 = vpack.c.b16 %v1561, %v1560
    %1564 = vrot.lane.b32.xlu0 %v948, 32
    %v1565 = vpop.permute.xlu0 %1564
    %1566 = vrot.lane.b32.xlu0 %v1562, 32
    %v1567 = vpop.permute.xlu0 %1566
    %1568 = vrot.lane.b32.xlu0 %v949, 32
    %v1569 = vpop.permute.xlu0 %1568
    %1570 = vrot.lane.b32.xlu0 %v1563, 32
    %v1571 = vpop.permute.xlu0 %1570
    %v1572 = vsel %vm779, %v1565, %v1567
    %v1573 = vsel %vm779, %v1569, %v1571
    %v1577 = vsel %vm84, %v1554, 0
    %1579 = vmatpush.bf16.msra.mxu0 0
    %1580 = vmatpush.bf16.msra.mxu0 0
    %1581 = vmatpush.bf16.msra.mxu0 0
    %1582 = vmatpush.bf16.msra.mxu0 0
    %1583 = vmatpush.bf16.msra.mxu0 0
    %1584 = vmatpush.bf16.msra.mxu0 0
    %1585 = vmatpush.bf16.msra.mxu0 %v1573
    %1586 = vmatpush.bf16.msra.mxu0 %v1572
    %1587 = vmatmul.bf16.gmra.mxu0 %v1577
    %v1588 = vpop.f32.mrf.mxu0
    %v1589 = vadd.f32 %v1556, %v1588
    %v1590 = vpop.f32.mrf.mxu0
    %v1591 = vadd.f32 %v1556, %v1590
    %1592 = vdwg.mxu0
    %v1593 = vmul.f32 %v1589, 0.5
    %v1594 = vmul.f32 %v1591, 0.5
    %v1595 = vmul.f32 %v1589, 0.044715
    %v1596 = vmul.f32 %v1591, 0.044715
    %v1597 = vmul.f32 %v1595, %v1589
    %v1598 = vmul.f32 %v1596, %v1591
    %v1599 = vmul.f32 %v1597, %v1589
    %v1600 = vmul.f32 %v1598, %v1591
    %v1601 = vadd.f32 %v1589, %v1599
    %v1602 = vadd.f32 %v1591, %v1600
    %v1603 = vmul.f32 %v1601, 0.7978846
    %v1604 = vmul.f32 %v1602, 0.7978846
    %v1605 = vtanh.pop %v1603
    %v1606 = vtanh.pop %v1604
    %v1607 = vadd.f32 %v1605, 1.0
    %v1608 = vadd.f32 %v1606, 1.0
    %v1609 = vmul.f32 %v1593, %v1607
    %v1610 = vmul.f32 %v1594, %v1608
    %v1611 = vpack.c.bf16 %v1610, %v1609
    %v1620 = vunpack.c.l.b16 %v877
    %v1621 = vunpack.c.l.b16 %v878
    %v1622 = vunpack.c.l.b16 %v879
    %v1623 = vunpack.c.l.b16 %v880
    %v1624 = vunpack.c.l.b16 %v881
    %v1625 = vunpack.c.l.b16 %v882
    %v1626 = vunpack.c.l.b16 %v883
    %v1627 = vunpack.c.l.b16 %v884
    %v1628 = vpack.c.b16 %v1621, %v1620
    %v1629 = vpack.c.b16 %v1623, %v1622
    %v1630 = vpack.c.b16 %v1625, %v1624
    %v1631 = vpack.c.b16 %v1627, %v1626
    %v1637 = vsel %vm844, %v1611, 0
    %1639 = vmatpush.bf16.msra.mxu0 0
    %1640 = vmatpush.bf16.msra.mxu0 0
    %1641 = vmatpush.bf16.msra.mxu0 0
    %1642 = vmatpush.bf16.msra.mxu0 0
    %1643 = vmatpush.bf16.msra.mxu0 %v1631
    %1644 = vmatpush.bf16.msra.mxu0 %v1630
    %1645 = vmatpush.bf16.msra.mxu0 %v1629
    %1646 = vmatpush.bf16.msra.mxu0 %v1628
    %1647 = vmatmul.bf16.gmra.mxu0 %v1637
    %v1648 = vpop.f32.mrf.mxu0
    %v1649 = vadd.f32 0.0, %v1648
    %v1650 = vpop.f32.mrf.mxu0
    %v1651 = vadd.f32 0.0, %v1650
    %1652 = vdwg.mxu0
    %v1653 = vadd.f32 %v1552, %v1649
    %v1654 = vadd.f32 %v1553, %v1651
    %v1655 = vperm.slane %v886, 5
    %v1656 = vadd.f32 %v1653, %v1655
    %v1657 = vadd.f32 %v1654, %v1655
    %1658 = vst.msk [vmem:[#allocation2] sm:$0xff] %vm84, %v1656
    %1659 = vst.msk [vmem:[#allocation2 + $0x8] sm:$0xff] %vm84, %v1657
    // Predicated region
    $region38: #{tpu_custom_call.1} parent=1 // pred_check
      %p1660 = pneg %p31
    $region39: #{tpu_custom_call.1} parent=1 // pred_check_branch
      %1662 = sbr.rel (%p1660) target = $region41
    $region40: #{tpu_custom_call.1} parent=1 // pred_region
      %v1663 = vld [vmem:[%s7] sm:$0xf]
      %v1664 = vsel %vm84, %v1656, 0.0
      %1665 = vadd.xlane.f32.xlu0 %v1664
      %v1666 = vpop.xlane.xlu0 %1665
      %v1667 = vsel %vm84, %v1657, 0.0
      %1668 = vadd.xlane.f32.xlu0 %v1667
      %v1669 = vpop.xlane.xlu0 %1668
      %v1670 = vmul.f32 %v1666, %v97
      %v1671 = vmul.f32 %v1669, %v97
      %v1672 = vsub.f32 %v1656, %v1670
      %v1673 = vsub.f32 %v1657, %v1671
      %v1674 = vmul.f32 %v1672, %v1672
      %v1675 = vmul.f32 %v1673, %v1673
      %v1676 = vsel %vm84, %v1674, 0.0
      %1677 = vadd.xlane.f32.xlu0 %v1676
      %v1678 = vpop.xlane.xlu0 %1677
      %v1679 = vsel %vm84, %v1675, 0.0
      %1680 = vadd.xlane.f32.xlu0 %v1679
      %v1681 = vpop.xlane.xlu0 %1680
      %v1682 = vmul.f32 %v1678, %v97
      %v1683 = vmul.f32 %v1681, %v97
      %v1684 = vadd.f32 %v1682, 1e-05
      %v1685 = vadd.f32 %v1683, 1e-05
      %v1686 = vrsqrt.pop %v1684
      %v1687 = vmul.f32 %v1686, %v1684
      %v1688 = vmul.f32 %v1687, %v1686
      %v1689 = vmul.f32 0.5, %v1688
      %v1690 = vsub.f32 1.5, %v1689
      %v1691 = vmul.f32 %v1686, %v1690
      %vm1692 = vweird.f32 %v1684
      %vm1693 = vweird.f32 %v1686
      %vm1694 = vmor %vm1692, %vm1693
      %v1695 = vsel %vm1694, %v1686, %v1691
      %v1696 = vrsqrt.pop %v1685
      %v1697 = vmul.f32 %v1696, %v1685
      %v1698 = vmul.f32 %v1697, %v1696
      %v1699 = vmul.f32 0.5, %v1698
      %v1700 = vsub.f32 1.5, %v1699
      %v1701 = vmul.f32 %v1696, %v1700
      %vm1702 = vweird.f32 %v1685
      %vm1703 = vweird.f32 %v1696
      %vm1704 = vmor %vm1702, %vm1703
      %v1705 = vsel %vm1704, %v1696, %v1701
      %v1706 = vmul.f32 %v1672, %v1695
      %v1707 = vmul.f32 %v1673, %v1705
      %v1708 = vperm.slane %v1663, 0
      %v1709 = vmul.f32 %v1706, %v1708
      %v1710 = vmul.f32 %v1707, %v1708
      %v1711 = vperm.slane %v1663, 1
      %v1712 = vadd.f32 %v1709, %v1711
      %v1713 = vadd.f32 %v1710, %v1711
      %v1714 = vperm.slane %v1663, 2
      %v1715 = vmul.f32 %v1712, %v1714
      %v1716 = vmul.f32 %v1713, %v1714
      %v1717 = vsel %vm84, %v1715, 0.0
      %1718 = vadd.xlane.f32.xlu0 %v1717
      %v1719 = vpop.xlane.xlu0 %1718
      %v1720 = vsel %vm84, %v1716, 0.0
      %1721 = vadd.xlane.f32.xlu0 %v1720
      %v1722 = vpop.xlane.xlu0 %1721
      %v1723 = vperm.slane %v1663, 3
      %v1724 = vadd.f32 %v1719, %v1723
      %v1725 = vadd.f32 %v1722, %v1723
      %vm1726 = vcmask 7168
      %v1727 = vsel %vm1726, %v1724, -inf
      %v1728 = vrot.slane %v1727, 4
      %v1729 = vmax.f32 %v1727, %v1728
      %v1730 = vrot.slane %v1729, 2
      %v1731 = vmax.f32 %v1729, %v1730
      %v1732 = vrot.slane %v1731, 1
      %v1733 = vmax.f32 %v1731, %v1732
      %v1734 = vsel %vm1726, %v1725, -inf
      %v1735 = vrot.slane %v1734, 4
      %v1736 = vmax.f32 %v1734, %v1735
      %v1737 = vrot.slane %v1736, 2
      %v1738 = vmax.f32 %v1736, %v1737
      %v1739 = vrot.slane %v1738, 1
      %v1740 = vmax.f32 %v1738, %v1739
      %v1741 = vsub.f32 %v1724, %v1733
      %v1742 = vsub.f32 %v1725, %v1740
      %v1743 = vmul.f32 %v1741, 1.442695
      %v1744 = vpow.pop %v1743
      %v1745 = vmul.f32 %v1742, 1.442695
      %v1746 = vpow.pop %v1745
      %v1747 = vsel %vm1726, %v1744, 0.0
      %v1748 = vrot.slane %v1747, 4
      %v1749 = vadd.f32 %v1747, %v1748
      %v1750 = vrot.slane %v1749, 2
      %v1751 = vadd.f32 %v1749, %v1750
      %v1752 = vrot.slane %v1751, 1
      %v1753 = vadd.f32 %v1751, %v1752
      %v1754 = vsel %vm1726, %v1746, 0.0
      %v1755 = vrot.slane %v1754, 4
      %v1756 = vadd.f32 %v1754, %v1755
      %v1757 = vrot.slane %v1756, 2
      %v1758 = vadd.f32 %v1756, %v1757
      %v1759 = vrot.slane %v1758, 1
      %v1760 = vadd.f32 %v1758, %v1759
      %v1761 = vrcp.pop %v1753
      %v1762 = vmul.f32 %v1753, %v1761
      %v1763 = vsub.f32 1.0, %v1762
      %v1764 = vmul.f32 %v1761, %v1763
      %v1765 = vadd.f32 %v1761, %v1764
      %vm1766 = vweird.f32 %v1753
      %vm1767 = vweird.f32 %v1761
      %vm1768 = vmor %vm1766, %vm1767
      %v1769 = vsel %vm1768, %v1761, %v1765
      %v1770 = vand.u32 2147483647, %v1753
      %vm1771 = vcmp.eq.f32.partialorder %v1770, 8.507059e+37
      %v1772 = vand.u32 %v1753, 2147483648
      %v1773 = vor.u32 1.1754944e-38, %v1772
      %v1774 = vsel %vm1771, %v1773, %v1769
      %v1775 = vmul.f32 %v1744, %v1774
      %v1776 = vrcp.pop %v1760
      %v1777 = vmul.f32 %v1760, %v1776
      %v1778 = vsub.f32 1.0, %v1777
      %v1779 = vmul.f32 %v1776, %v1778
      %v1780 = vadd.f32 %v1776, %v1779
      %vm1781 = vweird.f32 %v1760
      %vm1782 = vweird.f32 %v1776
      %vm1783 = vmor %vm1781, %vm1782
      %v1784 = vsel %vm1783, %v1776, %v1780
      %v1785 = vand.u32 2147483647, %v1760
      %vm1786 = vcmp.eq.f32.partialorder %v1785, 8.507059e+37
      %v1787 = vand.u32 %v1760, 2147483648
      %v1788 = vor.u32 1.1754944e-38, %v1787
      %v1789 = vsel %vm1786, %v1788, %v1784
      %v1790 = vmul.f32 %v1746, %v1789
      %1792 = vset.pattern.permute.xlu0 0
      %1793 = vperm.xlu0 %1792, %v1775
      %v1794 = vpop.permute.xlu0 %1793
      %1797 = vset.pattern.permute.xlu0 0
      %1798 = vperm.xlu0 %1797, %v1790
      %v1799 = vpop.permute.xlu0 %1798
      %v1801 = vmul.f32 %v1794, %v1712
      %v1802 = vmul.f32 %v1799, %v1713
      %v1803 = vsel %vm84, %v1801, 0.0
      %v1804 = vrot.slane %v1803, 4
      %v1805 = vadd.f32 %v1803, %v1804
      %v1806 = vrot.slane %v1805, 2
      %v1807 = vadd.f32 %v1805, %v1806
      %v1808 = vrot.slane %v1807, 1
      %v1809 = vadd.f32 %v1807, %v1808
      %v1810 = vsel %vm84, %v1802, 0.0
      %v1811 = vrot.slane %v1810, 4
      %v1812 = vadd.f32 %v1810, %v1811
      %v1813 = vrot.slane %v1812, 2
      %v1814 = vadd.f32 %v1812, %v1813
      %v1815 = vrot.slane %v1814, 1
      %v1816 = vadd.f32 %v1814, %v1815
      %vm1819 = vcmask 1041409
      %v1820 = vsel %vm1819, %v1816, %v1809
      %vm1822 = vcmask 254976
      %1823 = vst.msk [vmem:[#allocation3] sm:$0x3] %vm1822, %v1820
    $region41: #{tpu_custom_call.1} parent=1 // pred_fallthru
      _
    // Predicated region
    $region42: #{tpu_custom_call.1} parent=1 // pred_check
      _
    $region43: #{tpu_custom_call.1} parent=1 // pred_check_branch
      %1825 = sbr.rel (0) target = $region45
    $region44: #{tpu_custom_call.1} parent=1 // pred_region
      %1827 = vsyncadd [#allocation4], 0
      %s1829 = sshll.u32 [#allocation3], 4
      %s1830 = int_to_ptr.vmem [resolvable:$true] %s1829
      %s1831 = sshll.u32 %s8, 4
      %s1832 = int_to_ptr.hbm [resolvable:$true] %s1831
      %1834 = dma.vmem_to_hbm [thread:$0]  %s1830, 32, %s1832, [#allocation4]
    $region45: #{tpu_custom_call.1} parent=1 // pred_fallthru
      _
    // Predicated region
    $region46: #{tpu_custom_call.1} parent=1 // pred_check
      _
    $region47: #{tpu_custom_call.1} parent=1 // pred_check_branch
      %1836 = sbr.rel (0) target = $region49
    $region48: #{tpu_custom_call.1} parent=1 // pred_region
      %1838 = dma.done [#allocation4], 32
    $region49: #{tpu_custom_call.1} parent=1 // pred_fallthru
      _
    %1839 = vsyncpa [#allocation4], 1

</llo_original>
